<compile_context>
chip_gen: v7x
topology: tpu7x:2x2x1
jax: 0.10.0
libtpu: 0.0.40
codegen_flags: <defaults>
</compile_context>

<pallas_src>
import jax
import jax.numpy as jnp
from jax.experimental import pallas as pl
from jax.experimental.pallas import tpu as pltpu


_VMEM = pl.BlockSpec(memory_space=pltpu.MemorySpace.VMEM)
_N_GIN_LAYERS = 5
_LANE = 128


# ----------------------------------------------------------------------------
# Single fused Pallas kernel: 5 GIN conv layers + edge-MLP predictor
# ----------------------------------------------------------------------------
def fused_gin_predictor_kernel(*refs):
    """Ref layout (all VMEM):
       0              : adj_plus_I            [N, N]        (adjacency + identity)
       1              : h0                    [N, in_feat]
       2              : eagg0                 [N, in_feat]   (edge-emb sum on dst, layer 0 only)
       3 .. 22        : 5 x (w1, b1, w2, b2)  GIN per-layer MLP weights
       23, 24         : sel_u, sel_v          [E_lab, N]     one-hot row selectors
       25 .. 31       : pw1_top, pw1_bot, pb1, pw2, pb2, pw3_pad, pb3_pad
       32             : out_ref               [E_lab, 128]   (lane-dense, sliced outside)
    """
    adj = refs[0][...]
    h = refs[1][...]
    eagg0 = refs[2][...]

    # ---- 5 GIN conv layers, statically unrolled (per-layer weight shapes differ) ----
    for li in range(_N_GIN_LAYERS):
        base = 3 + 4 * li
        w1 = refs[base][...]
        b1 = refs[base + 1][...]
        w2 = refs[base + 2][...]
        b2 = refs[base + 3][...]

        # (1 + eps) * h_v + sum_{u in N(v)} h_u   with eps = 0, folded into adj+I
        z = jnp.dot(adj, h, preferred_element_type=jnp.float32)
        if li == 0:  # static branch: edge-embedding aggregation only feeds layer 0
            z = z + eagg0

        z1 = jnp.maximum(
            jnp.dot(z, w1, preferred_element_type=jnp.float32) + b1, 0.0)
        h = jnp.maximum(
            jnp.dot(z1, w2, preferred_element_type=jnp.float32) + b2, 0.0)

    # ---- MLPPredictor on labeled edges (gather + concat fused as matmuls) ----
    sel_u = refs[23][...]
    sel_v = refs[24][...]
    pw1t = refs[25][...]
    pw1b = refs[26][...]
    pb1 = refs[27][...]
    pw2 = refs[28][...]
    pb2 = refs[29][...]
    pw3 = refs[30][...]
    pb3 = refs[31][...]
    out_ref = refs[32]

    h_u = jnp.dot(sel_u, h, preferred_element_type=jnp.float32)
    h_v = jnp.dot(sel_v, h, preferred_element_type=jnp.float32)

    # concat([h_u, h_v]) @ W1 == h_u @ W1_top + h_v @ W1_bot
    t = jnp.maximum(
        jnp.dot(h_u, pw1t, preferred_element_type=jnp.float32)
        + jnp.dot(h_v, pw1b, preferred_element_type=jnp.float32) + pb1, 0.0)
    t = jnp.maximum(
        jnp.dot(t, pw2, preferred_element_type=jnp.float32) + pb2, 0.0)
    out_ref[...] = jnp.dot(t, pw3, preferred_element_type=jnp.float32) + pb3


# ----------------------------------------------------------------------------
# Model wrapper (glue in plain JAX: embedding lookup, scatter, one-hot, padding)
# ----------------------------------------------------------------------------
def model_forward(params, graph, pred_graph, node_feat, edge_feat_ids):
    src, dst, n_nodes = graph
    lsrc, ldst = pred_graph

    # --- nn.Embedding on edge features (glue: gather) ---
    edge_emb = params["emb"][edge_feat_ids]                          # [E, in_feat]

    # --- dense adjacency with self-term folded in: (adj + I) @ h == h + sum_N(h) ---
    adj_plus_i = (jnp.zeros((n_nodes, n_nodes), jnp.float32)
                  .at[dst, src].add(1.0)
                  + jnp.eye(n_nodes, dtype=jnp.float32))

    # --- edge-embedding sum scattered onto destination nodes (layer 0 only) ---
    eagg0 = jnp.zeros((n_nodes, edge_emb.shape[1]),
                      jnp.float32).at[dst].add(edge_emb)

    # --- one-hot row selectors for the predictor's endpoint gather (MXU-friendly) ---
    sel_u = jax.nn.one_hot(lsrc, n_nodes, dtype=jnp.float32)         # [E_lab, N]
    sel_v = jax.nn.one_hot(ldst, n_nodes, dtype=jnp.float32)         # [E_lab, N]

    # --- predictor weights: split W1 (avoids concat), pad W3/b3 to 128 lanes ---
    pw1, pb1, pw2, pb2, pw3, pb3 = params["pred"]
    d_node = pw1.shape[0] // 2
    pw1_top, pw1_bot = pw1[:d_node], pw1[d_node:]
    out_classes = pw3.shape[1]
    out_pad_cols = ((out_classes + _LANE - 1) // _LANE) * _LANE
    pad = out_pad_cols - out_classes
    pw3p = jnp.pad(pw3, ((0, 0), (0, pad)))
    pb3p = jnp.pad(pb3, ((0, 0), (0, pad)))

    gin_flat = []
    for (w1, b1, w2, b2) in params["gin"]:
        gin_flat += [w1, b1, w2, b2]

    inputs = ([adj_plus_i, node_feat, eagg0] + gin_flat
              + [sel_u, sel_v, pw1_top, pw1_bot, pb1, pw2, pb2, pw3p, pb3p])

    n_lab = lsrc.shape[0]
    out_pad = pl.pallas_call(
        fused_gin_predictor_kernel,
        out_shape=jax.ShapeDtypeStruct((n_lab, out_pad_cols), jnp.float32),
        in_specs=[_VMEM] * len(inputs),
        out_specs=_VMEM,
        compiler_params=pltpu.CompilerParams(
            vmem_limit_bytes=16 * 1024 * 1024),
    )(*inputs)

    return out_pad[:, :out_classes]                                  # [E_lab, out_classes]


# ----------------------------------------------------------------------------
# Deterministic parameter construction
# ----------------------------------------------------------------------------
def make_params(key, in_features, hidden_features, out_features,
                input_classes, out_classes):
    keys = iter(jax.random.split(key, 64))

    def lin(din, dout):
        w = 0.1 * jax.random.normal(next(keys), (din, dout), jnp.float32)
        b = 0.1 * jax.random.normal(next(keys), (1, dout), jnp.float32)
        return w, b

    # Embedding table
    emb = 0.1 * jax.random.normal(next(keys), (input_classes, in_features),
                                  jnp.float32)

    # GIN: 5 layers, each with a 2-layer MLP (Linear -> ReLU -> Linear)
    gin = []
    dims = [in_features] + [hidden_features] * 4 + [out_features]
    for li in range(5):
        d_in, d_out = dims[li], dims[li + 1]
        w1, b1 = lin(d_in, hidden_features)
        w2, b2 = lin(hidden_features, d_out)
        gin.append((w1, b1, w2, b2))

    # MLPPredictor: 3-layer MLP, in = 2*out_features, hidden = 4*out_features
    d_in, d_hid = 2 * out_features, 4 * out_features
    pw1, pb1 = lin(d_in, d_hid)
    pw2, pb2 = lin(d_hid, d_hid)
    pw3, pb3 = lin(d_hid, out_classes)

    return {"emb": emb, "gin": gin, "pred": (pw1, pb1, pw2, pb2, pw3, pb3)}


# ----------------------------------------------------------------------------
if __name__ == "__main__":
    in_features = 8
    hidden_features = 16
    out_features = 24
    input_classes = 10
    out_classes = 4

    n_nodes = 16
    n_edges = 32        # edges of the `features` graph (message passing)
    n_label_edges = 24  # edges of the `labels` graph (predictor)

    key = jax.random.PRNGKey(0)
    k_param, k_nf, k_ef, k_s, k_d, k_ls, k_ld = jax.random.split(key, 7)

    params = make_params(k_param, in_features, hidden_features, out_features,
                         input_classes, out_classes)

    node_feat = jax.random.normal(k_nf, (n_nodes, in_features), jnp.float32)
    edge_feat_ids = jax.random.randint(k_ef, (n_edges,), 0, input_classes)
    src = jax.random.randint(k_s, (n_edges,), 0, n_nodes)
    dst = jax.random.randint(k_d, (n_edges,), 0, n_nodes)
    lsrc = jax.random.randint(k_ls, (n_label_edges,), 0, n_nodes)
    ldst = jax.random.randint(k_ld, (n_label_edges,), 0, n_nodes)

    scores = model_forward(params, (src, dst, n_nodes), (lsrc, ldst),
                           node_feat, edge_feat_ids)
    scores = jax.block_until_ready(scores)

    assert scores.shape == (n_label_edges, out_classes)
    assert scores.dtype == jnp.float32
    print("KERNEL_OK")
</pallas_src>

<mosaic_0001>
module attributes {stable_mosaic.version = 11 : i64} {
  func.func @fused_gin_predictor_kernel(%arg0: memref<16x16xf32, #tpu.memory_space<vmem>>, %arg1: memref<16x8xf32, #tpu.memory_space<vmem>>, %arg2: memref<16x8xf32, #tpu.memory_space<vmem>>, %arg3: memref<8x16xf32, #tpu.memory_space<vmem>>, %arg4: memref<1x16xf32, #tpu.memory_space<vmem>>, %arg5: memref<16x16xf32, #tpu.memory_space<vmem>>, %arg6: memref<1x16xf32, #tpu.memory_space<vmem>>, %arg7: memref<16x16xf32, #tpu.memory_space<vmem>>, %arg8: memref<1x16xf32, #tpu.memory_space<vmem>>, %arg9: memref<16x16xf32, #tpu.memory_space<vmem>>, %arg10: memref<1x16xf32, #tpu.memory_space<vmem>>, %arg11: memref<16x16xf32, #tpu.memory_space<vmem>>, %arg12: memref<1x16xf32, #tpu.memory_space<vmem>>, %arg13: memref<16x16xf32, #tpu.memory_space<vmem>>, %arg14: memref<1x16xf32, #tpu.memory_space<vmem>>, %arg15: memref<16x16xf32, #tpu.memory_space<vmem>>, %arg16: memref<1x16xf32, #tpu.memory_space<vmem>>, %arg17: memref<16x16xf32, #tpu.memory_space<vmem>>, %arg18: memref<1x16xf32, #tpu.memory_space<vmem>>, %arg19: memref<16x16xf32, #tpu.memory_space<vmem>>, %arg20: memref<1x16xf32, #tpu.memory_space<vmem>>, %arg21: memref<16x24xf32, #tpu.memory_space<vmem>>, %arg22: memref<1x24xf32, #tpu.memory_space<vmem>>, %arg23: memref<24x16xf32, #tpu.memory_space<vmem>>, %arg24: memref<24x16xf32, #tpu.memory_space<vmem>>, %arg25: memref<24x96xf32, #tpu.memory_space<vmem>>, %arg26: memref<24x96xf32, #tpu.memory_space<vmem>>, %arg27: memref<1x96xf32, #tpu.memory_space<vmem>>, %arg28: memref<96x96xf32, #tpu.memory_space<vmem>>, %arg29: memref<1x96xf32, #tpu.memory_space<vmem>>, %arg30: memref<96x128xf32, #tpu.memory_space<vmem>>, %arg31: memref<1x128xf32, #tpu.memory_space<vmem>>, %arg32: memref<24x128xf32, #tpu.memory_space<vmem>>) attributes {dimension_semantics = [], scalar_prefetch = 0 : i64, scratch_operands = 0 : i64, tpu.core_type = #tpu.core_type<tc>} {
    %c0 = arith.constant 0 : index
    %c0_0 = arith.constant 0 : index
    %0 = vector.load %arg0[%c0, %c0_0] : memref<16x16xf32, #tpu.memory_space<vmem>>, vector<16x16xf32>
    %c0_1 = arith.constant 0 : index
    %c0_2 = arith.constant 0 : index
    %1 = vector.load %arg1[%c0_1, %c0_2] : memref<16x8xf32, #tpu.memory_space<vmem>>, vector<16x8xf32>
    %c0_3 = arith.constant 0 : index
    %c0_4 = arith.constant 0 : index
    %2 = vector.load %arg2[%c0_3, %c0_4] : memref<16x8xf32, #tpu.memory_space<vmem>>, vector<16x8xf32>
    %c0_5 = arith.constant 0 : index
    %c0_6 = arith.constant 0 : index
    %3 = vector.load %arg3[%c0_5, %c0_6] : memref<8x16xf32, #tpu.memory_space<vmem>>, vector<8x16xf32>
    %c0_7 = arith.constant 0 : index
    %c0_8 = arith.constant 0 : index
    %4 = vector.load %arg4[%c0_7, %c0_8] : memref<1x16xf32, #tpu.memory_space<vmem>>, vector<1x16xf32>
    %c0_9 = arith.constant 0 : index
    %c0_10 = arith.constant 0 : index
    %5 = vector.load %arg5[%c0_9, %c0_10] : memref<16x16xf32, #tpu.memory_space<vmem>>, vector<16x16xf32>
    %c0_11 = arith.constant 0 : index
    %c0_12 = arith.constant 0 : index
    %6 = vector.load %arg6[%c0_11, %c0_12] : memref<1x16xf32, #tpu.memory_space<vmem>>, vector<1x16xf32>
    %cst = arith.constant dense<0.000000e+00> : vector<16x8xf32>
    %7 = tpu.matmul %0, %1, %cst {dimension_numbers = #tpu.dot_dimension_numbers<[1], [0], [0], [1], [0, 0, 1, 1], [], []>} : vector<16x16xf32>, vector<16x8xf32>, vector<16x8xf32> -> vector<16x8xf32>
    %8 = arith.addf %7, %2 : vector<16x8xf32>
    %cst_13 = arith.constant dense<0.000000e+00> : vector<16x16xf32>
    %9 = tpu.matmul %8, %3, %cst_13 {dimension_numbers = #tpu.dot_dimension_numbers<[1], [0], [0], [1], [0, 0, 1, 1], [], []>} : vector<16x8xf32>, vector<8x16xf32>, vector<16x16xf32> -> vector<16x16xf32>
    %10 = vector.broadcast %4 : vector<1x16xf32> to vector<16x16xf32>
    %11 = arith.addf %9, %10 : vector<16x16xf32>
    %cst_14 = arith.constant 0.000000e+00 : f32
    %12 = vector.broadcast %cst_14 : f32 to vector<16x16xf32>
    %13 = arith.maximumf %11, %12 : vector<16x16xf32>
    %cst_15 = arith.constant dense<0.000000e+00> : vector<16x16xf32>
    %14 = tpu.matmul %13, %5, %cst_15 {dimension_numbers = #tpu.dot_dimension_numbers<[1], [0], [0], [1], [0, 0, 1, 1], [], []>} : vector<16x16xf32>, vector<16x16xf32>, vector<16x16xf32> -> vector<16x16xf32>
    %15 = vector.broadcast %6 : vector<1x16xf32> to vector<16x16xf32>
    %16 = arith.addf %14, %15 : vector<16x16xf32>
    %cst_16 = arith.constant 0.000000e+00 : f32
    %17 = vector.broadcast %cst_16 : f32 to vector<16x16xf32>
    %18 = arith.maximumf %16, %17 : vector<16x16xf32>
    %c0_17 = arith.constant 0 : index
    %c0_18 = arith.constant 0 : index
    %19 = vector.load %arg7[%c0_17, %c0_18] : memref<16x16xf32, #tpu.memory_space<vmem>>, vector<16x16xf32>
    %c0_19 = arith.constant 0 : index
    %c0_20 = arith.constant 0 : index
    %20 = vector.load %arg8[%c0_19, %c0_20] : memref<1x16xf32, #tpu.memory_space<vmem>>, vector<1x16xf32>
    %c0_21 = arith.constant 0 : index
    %c0_22 = arith.constant 0 : index
    %21 = vector.load %arg9[%c0_21, %c0_22] : memref<16x16xf32, #tpu.memory_space<vmem>>, vector<16x16xf32>
    %c0_23 = arith.constant 0 : index
    %c0_24 = arith.constant 0 : index
    %22 = vector.load %arg10[%c0_23, %c0_24] : memref<1x16xf32, #tpu.memory_space<vmem>>, vector<1x16xf32>
    %cst_25 = arith.constant dense<0.000000e+00> : vector<16x16xf32>
    %23 = tpu.matmul %0, %18, %cst_25 {dimension_numbers = #tpu.dot_dimension_numbers<[1], [0], [0], [1], [0, 0, 1, 1], [], []>} : vector<16x16xf32>, vector<16x16xf32>, vector<16x16xf32> -> vector<16x16xf32>
    %cst_26 = arith.constant dense<0.000000e+00> : vector<16x16xf32>
    %24 = tpu.matmul %23, %19, %cst_26 {dimension_numbers = #tpu.dot_dimension_numbers<[1], [0], [0], [1], [0, 0, 1, 1], [], []>} : vector<16x16xf32>, vector<16x16xf32>, vector<16x16xf32> -> vector<16x16xf32>
    %25 = vector.broadcast %20 : vector<1x16xf32> to vector<16x16xf32>
    %26 = arith.addf %24, %25 : vector<16x16xf32>
    %cst_27 = arith.constant 0.000000e+00 : f32
    %27 = vector.broadcast %cst_27 : f32 to vector<16x16xf32>
    %28 = arith.maximumf %26, %27 : vector<16x16xf32>
    %cst_28 = arith.constant dense<0.000000e+00> : vector<16x16xf32>
    %29 = tpu.matmul %28, %21, %cst_28 {dimension_numbers = #tpu.dot_dimension_numbers<[1], [0], [0], [1], [0, 0, 1, 1], [], []>} : vector<16x16xf32>, vector<16x16xf32>, vector<16x16xf32> -> vector<16x16xf32>
    %30 = vector.broadcast %22 : vector<1x16xf32> to vector<16x16xf32>
    %31 = arith.addf %29, %30 : vector<16x16xf32>
    %cst_29 = arith.constant 0.000000e+00 : f32
    %32 = vector.broadcast %cst_29 : f32 to vector<16x16xf32>
    %33 = arith.maximumf %31, %32 : vector<16x16xf32>
    %c0_30 = arith.constant 0 : index
    %c0_31 = arith.constant 0 : index
    %34 = vector.load %arg11[%c0_30, %c0_31] : memref<16x16xf32, #tpu.memory_space<vmem>>, vector<16x16xf32>
    %c0_32 = arith.constant 0 : index
    %c0_33 = arith.constant 0 : index
    %35 = vector.load %arg12[%c0_32, %c0_33] : memref<1x16xf32, #tpu.memory_space<vmem>>, vector<1x16xf32>
    %c0_34 = arith.constant 0 : index
    %c0_35 = arith.constant 0 : index
    %36 = vector.load %arg13[%c0_34, %c0_35] : memref<16x16xf32, #tpu.memory_space<vmem>>, vector<16x16xf32>
    %c0_36 = arith.constant 0 : index
    %c0_37 = arith.constant 0 : index
    %37 = vector.load %arg14[%c0_36, %c0_37] : memref<1x16xf32, #tpu.memory_space<vmem>>, vector<1x16xf32>
    %cst_38 = arith.constant dense<0.000000e+00> : vector<16x16xf32>
    %38 = tpu.matmul %0, %33, %cst_38 {dimension_numbers = #tpu.dot_dimension_numbers<[1], [0], [0], [1], [0, 0, 1, 1], [], []>} : vector<16x16xf32>, vector<16x16xf32>, vector<16x16xf32> -> vector<16x16xf32>
    %cst_39 = arith.constant dense<0.000000e+00> : vector<16x16xf32>
    %39 = tpu.matmul %38, %34, %cst_39 {dimension_numbers = #tpu.dot_dimension_numbers<[1], [0], [0], [1], [0, 0, 1, 1], [], []>} : vector<16x16xf32>, vector<16x16xf32>, vector<16x16xf32> -> vector<16x16xf32>
    %40 = vector.broadcast %35 : vector<1x16xf32> to vector<16x16xf32>
    %41 = arith.addf %39, %40 : vector<16x16xf32>
    %cst_40 = arith.constant 0.000000e+00 : f32
    %42 = vector.broadcast %cst_40 : f32 to vector<16x16xf32>
    %43 = arith.maximumf %41, %42 : vector<16x16xf32>
    %cst_41 = arith.constant dense<0.000000e+00> : vector<16x16xf32>
    %44 = tpu.matmul %43, %36, %cst_41 {dimension_numbers = #tpu.dot_dimension_numbers<[1], [0], [0], [1], [0, 0, 1, 1], [], []>} : vector<16x16xf32>, vector<16x16xf32>, vector<16x16xf32> -> vector<16x16xf32>
    %45 = vector.broadcast %37 : vector<1x16xf32> to vector<16x16xf32>
    %46 = arith.addf %44, %45 : vector<16x16xf32>
    %cst_42 = arith.constant 0.000000e+00 : f32
    %47 = vector.broadcast %cst_42 : f32 to vector<16x16xf32>
    %48 = arith.maximumf %46, %47 : vector<16x16xf32>
    %c0_43 = arith.constant 0 : index
    %c0_44 = arith.constant 0 : index
    %49 = vector.load %arg15[%c0_43, %c0_44] : memref<16x16xf32, #tpu.memory_space<vmem>>, vector<16x16xf32>
    %c0_45 = arith.constant 0 : index
    %c0_46 = arith.constant 0 : index
    %50 = vector.load %arg16[%c0_45, %c0_46] : memref<1x16xf32, #tpu.memory_space<vmem>>, vector<1x16xf32>
    %c0_47 = arith.constant 0 : index
    %c0_48 = arith.constant 0 : index
    %51 = vector.load %arg17[%c0_47, %c0_48] : memref<16x16xf32, #tpu.memory_space<vmem>>, vector<16x16xf32>
    %c0_49 = arith.constant 0 : index
    %c0_50 = arith.constant 0 : index
    %52 = vector.load %arg18[%c0_49, %c0_50] : memref<1x16xf32, #tpu.memory_space<vmem>>, vector<1x16xf32>
    %cst_51 = arith.constant dense<0.000000e+00> : vector<16x16xf32>
    %53 = tpu.matmul %0, %48, %cst_51 {dimension_numbers = #tpu.dot_dimension_numbers<[1], [0], [0], [1], [0, 0, 1, 1], [], []>} : vector<16x16xf32>, vector<16x16xf32>, vector<16x16xf32> -> vector<16x16xf32>
    %cst_52 = arith.constant dense<0.000000e+00> : vector<16x16xf32>
    %54 = tpu.matmul %53, %49, %cst_52 {dimension_numbers = #tpu.dot_dimension_numbers<[1], [0], [0], [1], [0, 0, 1, 1], [], []>} : vector<16x16xf32>, vector<16x16xf32>, vector<16x16xf32> -> vector<16x16xf32>
    %55 = vector.broadcast %50 : vector<1x16xf32> to vector<16x16xf32>
    %56 = arith.addf %54, %55 : vector<16x16xf32>
    %cst_53 = arith.constant 0.000000e+00 : f32
    %57 = vector.broadcast %cst_53 : f32 to vector<16x16xf32>
    %58 = arith.maximumf %56, %57 : vector<16x16xf32>
    %cst_54 = arith.constant dense<0.000000e+00> : vector<16x16xf32>
    %59 = tpu.matmul %58, %51, %cst_54 {dimension_numbers = #tpu.dot_dimension_numbers<[1], [0], [0], [1], [0, 0, 1, 1], [], []>} : vector<16x16xf32>, vector<16x16xf32>, vector<16x16xf32> -> vector<16x16xf32>
    %60 = vector.broadcast %52 : vector<1x16xf32> to vector<16x16xf32>
    %61 = arith.addf %59, %60 : vector<16x16xf32>
    %cst_55 = arith.constant 0.000000e+00 : f32
    %62 = vector.broadcast %cst_55 : f32 to vector<16x16xf32>
    %63 = arith.maximumf %61, %62 : vector<16x16xf32>
    %c0_56 = arith.constant 0 : index
    %c0_57 = arith.constant 0 : index
    %64 = vector.load %arg19[%c0_56, %c0_57] : memref<16x16xf32, #tpu.memory_space<vmem>>, vector<16x16xf32>
    %c0_58 = arith.constant 0 : index
    %c0_59 = arith.constant 0 : index
    %65 = vector.load %arg20[%c0_58, %c0_59] : memref<1x16xf32, #tpu.memory_space<vmem>>, vector<1x16xf32>
    %c0_60 = arith.constant 0 : index
    %c0_61 = arith.constant 0 : index
    %66 = vector.load %arg21[%c0_60, %c0_61] : memref<16x24xf32, #tpu.memory_space<vmem>>, vector<16x24xf32>
    %c0_62 = arith.constant 0 : index
    %c0_63 = arith.constant 0 : index
    %67 = vector.load %arg22[%c0_62, %c0_63] : memref<1x24xf32, #tpu.memory_space<vmem>>, vector<1x24xf32>
    %cst_64 = arith.constant dense<0.000000e+00> : vector<16x16xf32>
    %68 = tpu.matmul %0, %63, %cst_64 {dimension_numbers = #tpu.dot_dimension_numbers<[1], [0], [0], [1], [0, 0, 1, 1], [], []>} : vector<16x16xf32>, vector<16x16xf32>, vector<16x16xf32> -> vector<16x16xf32>
    %cst_65 = arith.constant dense<0.000000e+00> : vector<16x16xf32>
    %69 = tpu.matmul %68, %64, %cst_65 {dimension_numbers = #tpu.dot_dimension_numbers<[1], [0], [0], [1], [0, 0, 1, 1], [], []>} : vector<16x16xf32>, vector<16x16xf32>, vector<16x16xf32> -> vector<16x16xf32>
    %70 = vector.broadcast %65 : vector<1x16xf32> to vector<16x16xf32>
    %71 = arith.addf %69, %70 : vector<16x16xf32>
    %cst_66 = arith.constant 0.000000e+00 : f32
    %72 = vector.broadcast %cst_66 : f32 to vector<16x16xf32>
    %73 = arith.maximumf %71, %72 : vector<16x16xf32>
    %cst_67 = arith.constant dense<0.000000e+00> : vector<16x24xf32>
    %74 = tpu.matmul %73, %66, %cst_67 {dimension_numbers = #tpu.dot_dimension_numbers<[1], [0], [0], [1], [0, 0, 1, 1], [], []>} : vector<16x16xf32>, vector<16x24xf32>, vector<16x24xf32> -> vector<16x24xf32>
    %75 = vector.broadcast %67 : vector<1x24xf32> to vector<16x24xf32>
    %76 = arith.addf %74, %75 : vector<16x24xf32>
    %cst_68 = arith.constant 0.000000e+00 : f32
    %77 = vector.broadcast %cst_68 : f32 to vector<16x24xf32>
    %78 = arith.maximumf %76, %77 : vector<16x24xf32>
    %c0_69 = arith.constant 0 : index
    %c0_70 = arith.constant 0 : index
    %79 = vector.load %arg23[%c0_69, %c0_70] : memref<24x16xf32, #tpu.memory_space<vmem>>, vector<24x16xf32>
    %c0_71 = arith.constant 0 : index
    %c0_72 = arith.constant 0 : index
    %80 = vector.load %arg24[%c0_71, %c0_72] : memref<24x16xf32, #tpu.memory_space<vmem>>, vector<24x16xf32>
    %c0_73 = arith.constant 0 : index
    %c0_74 = arith.constant 0 : index
    %81 = vector.load %arg25[%c0_73, %c0_74] : memref<24x96xf32, #tpu.memory_space<vmem>>, vector<24x96xf32>
    %c0_75 = arith.constant 0 : index
    %c0_76 = arith.constant 0 : index
    %82 = vector.load %arg26[%c0_75, %c0_76] : memref<24x96xf32, #tpu.memory_space<vmem>>, vector<24x96xf32>
    %c0_77 = arith.constant 0 : index
    %c0_78 = arith.constant 0 : index
    %83 = vector.load %arg27[%c0_77, %c0_78] : memref<1x96xf32, #tpu.memory_space<vmem>>, vector<1x96xf32>
    %c0_79 = arith.constant 0 : index
    %c0_80 = arith.constant 0 : index
    %84 = vector.load %arg28[%c0_79, %c0_80] : memref<96x96xf32, #tpu.memory_space<vmem>>, vector<96x96xf32>
    %c0_81 = arith.constant 0 : index
    %c0_82 = arith.constant 0 : index
    %85 = vector.load %arg29[%c0_81, %c0_82] : memref<1x96xf32, #tpu.memory_space<vmem>>, vector<1x96xf32>
    %c0_83 = arith.constant 0 : index
    %c0_84 = arith.constant 0 : index
    %86 = vector.load %arg30[%c0_83, %c0_84] : memref<96x128xf32, #tpu.memory_space<vmem>>, vector<96x128xf32>
    %c0_85 = arith.constant 0 : index
    %c0_86 = arith.constant 0 : index
    %87 = vector.load %arg31[%c0_85, %c0_86] : memref<1x128xf32, #tpu.memory_space<vmem>>, vector<1x128xf32>
    %cst_87 = arith.constant dense<0.000000e+00> : vector<24x24xf32>
    %88 = tpu.matmul %79, %78, %cst_87 {dimension_numbers = #tpu.dot_dimension_numbers<[1], [0], [0], [1], [0, 0, 1, 1], [], []>} : vector<24x16xf32>, vector<16x24xf32>, vector<24x24xf32> -> vector<24x24xf32>
    %cst_88 = arith.constant dense<0.000000e+00> : vector<24x24xf32>
    %89 = tpu.matmul %80, %78, %cst_88 {dimension_numbers = #tpu.dot_dimension_numbers<[1], [0], [0], [1], [0, 0, 1, 1], [], []>} : vector<24x16xf32>, vector<16x24xf32>, vector<24x24xf32> -> vector<24x24xf32>
    %cst_89 = arith.constant dense<0.000000e+00> : vector<24x96xf32>
    %90 = tpu.matmul %88, %81, %cst_89 {dimension_numbers = #tpu.dot_dimension_numbers<[1], [0], [0], [1], [0, 0, 1, 1], [], []>} : vector<24x24xf32>, vector<24x96xf32>, vector<24x96xf32> -> vector<24x96xf32>
    %cst_90 = arith.constant dense<0.000000e+00> : vector<24x96xf32>
    %91 = tpu.matmul %89, %82, %cst_90 {dimension_numbers = #tpu.dot_dimension_numbers<[1], [0], [0], [1], [0, 0, 1, 1], [], []>} : vector<24x24xf32>, vector<24x96xf32>, vector<24x96xf32> -> vector<24x96xf32>
    %92 = arith.addf %90, %91 : vector<24x96xf32>
    %93 = vector.broadcast %83 : vector<1x96xf32> to vector<24x96xf32>
    %94 = arith.addf %92, %93 : vector<24x96xf32>
    %cst_91 = arith.constant 0.000000e+00 : f32
    %95 = vector.broadcast %cst_91 : f32 to vector<24x96xf32>
    %96 = arith.maximumf %94, %95 : vector<24x96xf32>
    %cst_92 = arith.constant dense<0.000000e+00> : vector<24x96xf32>
    %97 = tpu.matmul %96, %84, %cst_92 {dimension_numbers = #tpu.dot_dimension_numbers<[1], [0], [0], [1], [0, 0, 1, 1], [], []>} : vector<24x96xf32>, vector<96x96xf32>, vector<24x96xf32> -> vector<24x96xf32>
    %98 = vector.broadcast %85 : vector<1x96xf32> to vector<24x96xf32>
    %99 = arith.addf %97, %98 : vector<24x96xf32>
    %cst_93 = arith.constant 0.000000e+00 : f32
    %100 = vector.broadcast %cst_93 : f32 to vector<24x96xf32>
    %101 = arith.maximumf %99, %100 : vector<24x96xf32>
    %cst_94 = arith.constant dense<0.000000e+00> : vector<24x128xf32>
    %102 = tpu.matmul %101, %86, %cst_94 {dimension_numbers = #tpu.dot_dimension_numbers<[1], [0], [0], [1], [0, 0, 1, 1], [], []>} : vector<24x96xf32>, vector<96x128xf32>, vector<24x128xf32> -> vector<24x128xf32>
    %103 = vector.broadcast %87 : vector<1x128xf32> to vector<24x128xf32>
    %104 = arith.addf %102, %103 : vector<24x128xf32>
    %c0_95 = arith.constant 0 : index
    %c0_96 = arith.constant 0 : index
    %105 = vector.load %arg32[%c0_95, %c0_96] : memref<24x128xf32, #tpu.memory_space<vmem>>, vector<24x128xf32>
    tpu.vector_store %arg32[%c0_95, %c0_96], %104 {strides = array<i32>} : memref<24x128xf32, #tpu.memory_space<vmem>>, vector<24x128xf32>,
    return
  }
}

</mosaic_0001>

<llo_original>
// kernel: tpu_custom_call.1
$region0: #{tpu_custom_call.1}
  #allocation0 [shape = 'u32[]', space=smem, size = 0x4, offset = 0x4, fixed_abs, tag = 'smem constant byte address 0x4 - core index']
  #allocation1 [shape = 'u32[144,128]{1,0:T(1,128)}', space=vmem, size = 0x12000, scoped, tag = 'internal scratch']
  %s0 = inlined_call_operand.smem [shape: u32[33], index: -1, kind: input, shape index: {}]
  %s1 = sld [smem:[%s0]]
  %s2 = scalar_lea.smem %s0, 1
  %s3 = sld [smem:[%s2]]
  %s4 = scalar_lea.smem %s0, 2
  %s5 = sld [smem:[%s4]]
  %s6 = scalar_lea.smem %s0, 3
  %s7 = sld [smem:[%s6]]
  %s8 = scalar_lea.smem %s0, 4
  %s9 = sld [smem:[%s8]]
  %s10 = scalar_lea.smem %s0, 5
  %s11 = sld [smem:[%s10]]
  %s12 = scalar_lea.smem %s0, 6
  %s13 = sld [smem:[%s12]]
  %s14 = scalar_lea.smem %s0, 7
  %s15 = sld [smem:[%s14]]
  %s16 = scalar_lea.smem %s0, 8
  %s17 = sld [smem:[%s16]]
  %s18 = scalar_lea.smem %s0, 9
  %s19 = sld [smem:[%s18]]
  %s20 = scalar_lea.smem %s0, 10
  %s21 = sld [smem:[%s20]]
  %s22 = scalar_lea.smem %s0, 11
  %s23 = sld [smem:[%s22]]
  %s24 = scalar_lea.smem %s0, 12
  %s25 = sld [smem:[%s24]]
  %s26 = scalar_lea.smem %s0, 13
  %s27 = sld [smem:[%s26]]
  %s28 = scalar_lea.smem %s0, 14
  %s29 = sld [smem:[%s28]]
  %s30 = scalar_lea.smem %s0, 15
  %s31 = sld [smem:[%s30]]
  %s32 = scalar_lea.smem %s0, 16
  %s33 = sld [smem:[%s32]]
  %s34 = scalar_lea.smem %s0, 17
  %s35 = sld [smem:[%s34]]
  %s36 = scalar_lea.smem %s0, 18
  %s37 = sld [smem:[%s36]]
  %s38 = scalar_lea.smem %s0, 19
  %s39 = sld [smem:[%s38]]
  %s40 = scalar_lea.smem %s0, 20
  %s41 = sld [smem:[%s40]]
  %s42 = scalar_lea.smem %s0, 21
  %s43 = sld [smem:[%s42]]
  %s44 = scalar_lea.smem %s0, 22
  %s45 = sld [smem:[%s44]]
  %s46 = scalar_lea.smem %s0, 23
  %s47 = sld [smem:[%s46]]
  %s48 = scalar_lea.smem %s0, 24
  %s49 = sld [smem:[%s48]]
  %s50 = scalar_lea.smem %s0, 25
  %s51 = sld [smem:[%s50]]
  %s52 = scalar_lea.smem %s0, 26
  %s53 = sld [smem:[%s52]]
  %s54 = scalar_lea.smem %s0, 27
  %s55 = sld [smem:[%s54]]
  %s56 = scalar_lea.smem %s0, 28
  %s57 = sld [smem:[%s56]]
  %s58 = scalar_lea.smem %s0, 29
  %s59 = sld [smem:[%s58]]
  %s60 = scalar_lea.smem %s0, 30
  %s61 = sld [smem:[%s60]]
  %s62 = scalar_lea.smem %s0, 31
  %s63 = sld [smem:[%s62]]
  %s64 = scalar_lea.smem %s0, 32
  %s65 = sld [smem:[%s64]]
  %s66 = sld [smem:[#allocation0]]
  $region218: #{tpu_custom_call.1} parent=0
    _
  %s68 = ssub.s32 1, %s66
  %s69 = scalar_select 0, %s68, %s66
  $region1: #{tpu_custom_call.1} parent=0
    #allocation2 [shape = 'u8[8192]{0}', space=vmem, size = 0x2000, scoped, tag = 'input window, operand 0, single buffered']
    #allocation3 [shape = 's32[1]{0}', space=sflag, size = 0x4, scoped, tag = 'scoped memory for tpu_custom_call.1']
    #allocation4 [shape = 's32[1]{0}', space=sflag, size = 0x4, scoped, tag = 'scoped memory for tpu_custom_call.1']
    #allocation5 [shape = 'u8[4096]{0}', space=vmem, size = 0x1000, scoped, tag = 'input window, operand 3, single buffered']
    #allocation6 [shape = 's32[1]{0}', space=sflag, size = 0x4, scoped, tag = 'scoped memory for tpu_custom_call.1']
    #allocation7 [shape = 'u8[512]{0}', space=vmem, size = 0x400, scoped, tag = 'input window, operand 4, single buffered']
    #allocation8 [shape = 'u8[8192]{0}', space=vmem, size = 0x2000, scoped, tag = 'input window, operand 5, single buffered']
    #allocation9 [shape = 's32[1]{0}', space=sflag, size = 0x4, scoped, tag = 'scoped memory for tpu_custom_call.1']
    #allocation10 [shape = 'u8[512]{0}', space=vmem, size = 0x400, scoped, tag = 'input window, operand 6, single buffered']
    #allocation11 [shape = 'u8[8192]{0}', space=vmem, size = 0x2000, scoped, tag = 'input window, operand 7, single buffered']
    #allocation12 [shape = 's32[1]{0}', space=sflag, size = 0x4, scoped, tag = 'scoped memory for tpu_custom_call.1']
    #allocation13 [shape = 'u8[512]{0}', space=vmem, size = 0x400, scoped, tag = 'input window, operand 8, single buffered']
    #allocation14 [shape = 'u8[8192]{0}', space=vmem, size = 0x2000, scoped, tag = 'input window, operand 9, single buffered']
    #allocation15 [shape = 's32[1]{0}', space=sflag, size = 0x4, scoped, tag = 'scoped memory for tpu_custom_call.1']
    #allocation16 [shape = 'u8[512]{0}', space=vmem, size = 0x400, scoped, tag = 'input window, operand 10, single buffered']
    #allocation17 [shape = 'u8[8192]{0}', space=vmem, size = 0x2000, scoped, tag = 'input window, operand 11, single buffered']
    #allocation18 [shape = 's32[1]{0}', space=sflag, size = 0x4, scoped, tag = 'scoped memory for tpu_custom_call.1']
    #allocation19 [shape = 'u8[512]{0}', space=vmem, size = 0x400, scoped, tag = 'input window, operand 12, single buffered']
    #allocation20 [shape = 'u8[8192]{0}', space=vmem, size = 0x2000, scoped, tag = 'input window, operand 13, single buffered']
    #allocation21 [shape = 's32[1]{0}', space=sflag, size = 0x4, scoped, tag = 'scoped memory for tpu_custom_call.1']
    #allocation22 [shape = 'u8[512]{0}', space=vmem, size = 0x400, scoped, tag = 'input window, operand 14, single buffered']
    #allocation23 [shape = 'u8[8192]{0}', space=vmem, size = 0x2000, scoped, tag = 'input window, operand 15, single buffered']
    #allocation24 [shape = 's32[1]{0}', space=sflag, size = 0x4, scoped, tag = 'scoped memory for tpu_custom_call.1']
    #allocation25 [shape = 'u8[512]{0}', space=vmem, size = 0x400, scoped, tag = 'input window, operand 16, single buffered']
    #allocation26 [shape = 'u8[8192]{0}', space=vmem, size = 0x2000, scoped, tag = 'input window, operand 17, single buffered']
    #allocation27 [shape = 's32[1]{0}', space=sflag, size = 0x4, scoped, tag = 'scoped memory for tpu_custom_call.1']
    #allocation28 [shape = 'u8[8192]{0}', space=vmem, size = 0x2000, scoped, tag = 'input window, operand 19, single buffered']
    #allocation29 [shape = 'u8[8192]{0}', space=vmem, size = 0x2000, scoped, tag = 'input window, operand 21, single buffered']
    #allocation30 [shape = 's32[1]{0}', space=sflag, size = 0x4, scoped, tag = 'scoped memory for tpu_custom_call.1']
    #allocation31 [shape = 'u8[512]{0}', space=vmem, size = 0x400, scoped, tag = 'input window, operand 22, single buffered']
    #allocation32 [shape = 'u8[12288]{0}', space=vmem, size = 0x3000, scoped, tag = 'input window, operand 26, single buffered']
    #allocation33 [shape = 's32[1]{0}', space=sflag, size = 0x4, scoped, tag = 'scoped memory for tpu_custom_call.1']
    #allocation34 [shape = 'u8[12288]{0}', space=vmem, size = 0x3000, scoped, tag = 'output window, operand 0, single buffered']
    %70 = vsyncpa [#allocation3], 0
    %71 = vsyncpa [#allocation6], 0
    %72 = vsyncpa [#allocation9], 0
    %73 = vsyncpa [#allocation12], 0
    %74 = vsyncpa [#allocation15], 0
    %75 = vsyncpa [#allocation18], 0
    %76 = vsyncpa [#allocation21], 0
    %77 = vsyncpa [#allocation24], 0
    %78 = vsyncpa [#allocation27], 0
    %79 = vsyncpa [#allocation30], 0
    %80 = vsyncpa [#allocation33], 0
    %81 = vsyncpa [#allocation4], 0
    // Predicated region
    $region2: #{tpu_custom_call.1} parent=1 // pred_check
      _
    $region3: #{tpu_custom_call.1} parent=1 // pred_check_branch
      %83 = sbr.rel (0) target = $region5
    $region4: #{tpu_custom_call.1} parent=1 // pred_region
      %s85 = ssub.s32 256, 256
      %86 = vsyncadd [#allocation3], %s85
      %s87 = sshll.u32 [#allocation2], 4
      %s88 = int_to_ptr.vmem [resolvable:$true] %s87
      %93 = dma.hbm_to_vmem [thread:$0]  %s1, 256, %s88, [#allocation3], 128, 128, 8
    $region5: #{tpu_custom_call.1} parent=1 // pred_fallthru
      _
    // Predicated region
    $region6: #{tpu_custom_call.1} parent=1 // pred_check
      _
    $region7: #{tpu_custom_call.1} parent=1 // pred_check_branch
      %95 = sbr.rel (0) target = $region9
    $region8: #{tpu_custom_call.1} parent=1 // pred_region
      _
    $region9: #{tpu_custom_call.1} parent=1 // pred_fallthru
      _
    // Predicated region
    $region10: #{tpu_custom_call.1} parent=1 // pred_check
      _
    $region11: #{tpu_custom_call.1} parent=1 // pred_check_branch
      %97 = sbr.rel (0) target = $region13
    $region12: #{tpu_custom_call.1} parent=1 // pred_region
      _
    $region13: #{tpu_custom_call.1} parent=1 // pred_fallthru
      _
    // Predicated region
    $region14: #{tpu_custom_call.1} parent=1 // pred_check
      _
    $region15: #{tpu_custom_call.1} parent=1 // pred_check_branch
      %99 = sbr.rel (0) target = $region17
    $region16: #{tpu_custom_call.1} parent=1 // pred_region
      %s101 = ssub.s32 128, 128
      %102 = vsyncadd [#allocation6], %s101
      %s104 = sshll.u32 [#allocation5], 4
      %s105 = int_to_ptr.vmem [resolvable:$true] %s104
      %107 = dma.hbm_to_vmem [thread:$0]  %s7, 128, %s105, [#allocation6]
    $region17: #{tpu_custom_call.1} parent=1 // pred_fallthru
      _
    // Predicated region
    $region18: #{tpu_custom_call.1} parent=1 // pred_check
      _
    $region19: #{tpu_custom_call.1} parent=1 // pred_check_branch
      %109 = sbr.rel (0) target = $region21
    $region20: #{tpu_custom_call.1} parent=1 // pred_region
      %s111 = ssub.s32 16, 16
      %112 = vsyncadd [#allocation6], %s111
      %s114 = sshll.u32 [#allocation7], 4
      %s115 = int_to_ptr.vmem [resolvable:$true] %s114
      %117 = dma.hbm_to_vmem [thread:$0]  %s9, 16, %s115, [#allocation6]
    $region21: #{tpu_custom_call.1} parent=1 // pred_fallthru
      _
    // Predicated region
    $region22: #{tpu_custom_call.1} parent=1 // pred_check
      _
    $region23: #{tpu_custom_call.1} parent=1 // pred_check_branch
      %119 = sbr.rel (0) target = $region25
    $region24: #{tpu_custom_call.1} parent=1 // pred_region
      %s121 = ssub.s32 256, 256
      %122 = vsyncadd [#allocation9], %s121
      %s123 = sshll.u32 [#allocation8], 4
      %s124 = int_to_ptr.vmem [resolvable:$true] %s123
      %129 = dma.hbm_to_vmem [thread:$0]  %s11, 256, %s124, [#allocation9], 128, 128, 8
    $region25: #{tpu_custom_call.1} parent=1 // pred_fallthru
      _
    // Predicated region
    $region26: #{tpu_custom_call.1} parent=1 // pred_check
      _
    $region27: #{tpu_custom_call.1} parent=1 // pred_check_branch
      %131 = sbr.rel (0) target = $region29
    $region28: #{tpu_custom_call.1} parent=1 // pred_region
      %s133 = ssub.s32 16, 16
      %134 = vsyncadd [#allocation9], %s133
      %s136 = sshll.u32 [#allocation10], 4
      %s137 = int_to_ptr.vmem [resolvable:$true] %s136
      %139 = dma.hbm_to_vmem [thread:$0]  %s13, 16, %s137, [#allocation9]
    $region29: #{tpu_custom_call.1} parent=1 // pred_fallthru
      _
    // Predicated region
    $region30: #{tpu_custom_call.1} parent=1 // pred_check
      _
    $region31: #{tpu_custom_call.1} parent=1 // pred_check_branch
      %141 = sbr.rel (0) target = $region33
    $region32: #{tpu_custom_call.1} parent=1 // pred_region
      %s143 = ssub.s32 256, 256
      %144 = vsyncadd [#allocation12], %s143
      %s145 = sshll.u32 [#allocation11], 4
      %s146 = int_to_ptr.vmem [resolvable:$true] %s145
      %151 = dma.hbm_to_vmem [thread:$0]  %s15, 256, %s146, [#allocation12], 128, 128, 8
    $region33: #{tpu_custom_call.1} parent=1 // pred_fallthru
      _
    // Predicated region
    $region34: #{tpu_custom_call.1} parent=1 // pred_check
      _
    $region35: #{tpu_custom_call.1} parent=1 // pred_check_branch
      %153 = sbr.rel (0) target = $region37
    $region36: #{tpu_custom_call.1} parent=1 // pred_region
      %s155 = ssub.s32 16, 16
      %156 = vsyncadd [#allocation12], %s155
      %s158 = sshll.u32 [#allocation13], 4
      %s159 = int_to_ptr.vmem [resolvable:$true] %s158
      %161 = dma.hbm_to_vmem [thread:$0]  %s17, 16, %s159, [#allocation12]
    $region37: #{tpu_custom_call.1} parent=1 // pred_fallthru
      _
    // Predicated region
    $region38: #{tpu_custom_call.1} parent=1 // pred_check
      _
    $region39: #{tpu_custom_call.1} parent=1 // pred_check_branch
      %163 = sbr.rel (0) target = $region41
    $region40: #{tpu_custom_call.1} parent=1 // pred_region
      %s165 = ssub.s32 256, 256
      %166 = vsyncadd [#allocation15], %s165
      %s167 = sshll.u32 [#allocation14], 4
      %s168 = int_to_ptr.vmem [resolvable:$true] %s167
      %173 = dma.hbm_to_vmem [thread:$0]  %s19, 256, %s168, [#allocation15], 128, 128, 8
    $region41: #{tpu_custom_call.1} parent=1 // pred_fallthru
      _
    // Predicated region
    $region42: #{tpu_custom_call.1} parent=1 // pred_check
      _
    $region43: #{tpu_custom_call.1} parent=1 // pred_check_branch
      %175 = sbr.rel (0) target = $region45
    $region44: #{tpu_custom_call.1} parent=1 // pred_region
      %s177 = ssub.s32 16, 16
      %178 = vsyncadd [#allocation15], %s177
      %s180 = sshll.u32 [#allocation16], 4
      %s181 = int_to_ptr.vmem [resolvable:$true] %s180
      %183 = dma.hbm_to_vmem [thread:$0]  %s21, 16, %s181, [#allocation15]
    $region45: #{tpu_custom_call.1} parent=1 // pred_fallthru
      _
    // Predicated region
    $region46: #{tpu_custom_call.1} parent=1 // pred_check
      _
    $region47: #{tpu_custom_call.1} parent=1 // pred_check_branch
      %185 = sbr.rel (0) target = $region49
    $region48: #{tpu_custom_call.1} parent=1 // pred_region
      %s187 = ssub.s32 256, 256
      %188 = vsyncadd [#allocation18], %s187
      %s189 = sshll.u32 [#allocation17], 4
      %s190 = int_to_ptr.vmem [resolvable:$true] %s189
      %195 = dma.hbm_to_vmem [thread:$0]  %s23, 256, %s190, [#allocation18], 128, 128, 8
    $region49: #{tpu_custom_call.1} parent=1 // pred_fallthru
      _
    // Predicated region
    $region50: #{tpu_custom_call.1} parent=1 // pred_check
      _
    $region51: #{tpu_custom_call.1} parent=1 // pred_check_branch
      %197 = sbr.rel (0) target = $region53
    $region52: #{tpu_custom_call.1} parent=1 // pred_region
      %s199 = ssub.s32 16, 16
      %200 = vsyncadd [#allocation18], %s199
      %s202 = sshll.u32 [#allocation19], 4
      %s203 = int_to_ptr.vmem [resolvable:$true] %s202
      %205 = dma.hbm_to_vmem [thread:$0]  %s25, 16, %s203, [#allocation18]
    $region53: #{tpu_custom_call.1} parent=1 // pred_fallthru
      _
    // Predicated region
    $region54: #{tpu_custom_call.1} parent=1 // pred_check
      _
    $region55: #{tpu_custom_call.1} parent=1 // pred_check_branch
      %207 = sbr.rel (0) target = $region57
    $region56: #{tpu_custom_call.1} parent=1 // pred_region
      %s209 = ssub.s32 256, 256
      %210 = vsyncadd [#allocation21], %s209
      %s211 = sshll.u32 [#allocation20], 4
      %s212 = int_to_ptr.vmem [resolvable:$true] %s211
      %217 = dma.hbm_to_vmem [thread:$0]  %s27, 256, %s212, [#allocation21], 128, 128, 8
    $region57: #{tpu_custom_call.1} parent=1 // pred_fallthru
      _
    // Predicated region
    $region58: #{tpu_custom_call.1} parent=1 // pred_check
      _
    $region59: #{tpu_custom_call.1} parent=1 // pred_check_branch
      %219 = sbr.rel (0) target = $region61
    $region60: #{tpu_custom_call.1} parent=1 // pred_region
      %s221 = ssub.s32 16, 16
      %222 = vsyncadd [#allocation21], %s221
      %s224 = sshll.u32 [#allocation22], 4
      %s225 = int_to_ptr.vmem [resolvable:$true] %s224
      %227 = dma.hbm_to_vmem [thread:$0]  %s29, 16, %s225, [#allocation21]
    $region61: #{tpu_custom_call.1} parent=1 // pred_fallthru
      _
    // Predicated region
    $region62: #{tpu_custom_call.1} parent=1 // pred_check
      _
    $region63: #{tpu_custom_call.1} parent=1 // pred_check_branch
      %229 = sbr.rel (0) target = $region65
    $region64: #{tpu_custom_call.1} parent=1 // pred_region
      %s231 = ssub.s32 256, 256
      %232 = vsyncadd [#allocation24], %s231
      %s233 = sshll.u32 [#allocation23], 4
      %s234 = int_to_ptr.vmem [resolvable:$true] %s233
      %239 = dma.hbm_to_vmem [thread:$0]  %s31, 256, %s234, [#allocation24], 128, 128, 8
    $region65: #{tpu_custom_call.1} parent=1 // pred_fallthru
      _
    // Predicated region
    $region66: #{tpu_custom_call.1} parent=1 // pred_check
      _
    $region67: #{tpu_custom_call.1} parent=1 // pred_check_branch
      %241 = sbr.rel (0) target = $region69
    $region68: #{tpu_custom_call.1} parent=1 // pred_region
      %s243 = ssub.s32 16, 16
      %244 = vsyncadd [#allocation24], %s243
      %s246 = sshll.u32 [#allocation25], 4
      %s247 = int_to_ptr.vmem [resolvable:$true] %s246
      %249 = dma.hbm_to_vmem [thread:$0]  %s33, 16, %s247, [#allocation24]
    $region69: #{tpu_custom_call.1} parent=1 // pred_fallthru
      _
    // Predicated region
    $region70: #{tpu_custom_call.1} parent=1 // pred_check
      _
    $region71: #{tpu_custom_call.1} parent=1 // pred_check_branch
      %251 = sbr.rel (0) target = $region73
    $region72: #{tpu_custom_call.1} parent=1 // pred_region
      %s253 = ssub.s32 256, 256
      %254 = vsyncadd [#allocation27], %s253
      %s255 = sshll.u32 [#allocation26], 4
      %s256 = int_to_ptr.vmem [resolvable:$true] %s255
      %261 = dma.hbm_to_vmem [thread:$0]  %s35, 256, %s256, [#allocation27], 128, 128, 8
    $region73: #{tpu_custom_call.1} parent=1 // pred_fallthru
      _
    // Predicated region
    $region74: #{tpu_custom_call.1} parent=1 // pred_check
      _
    $region75: #{tpu_custom_call.1} parent=1 // pred_check_branch
      %263 = sbr.rel (0) target = $region77
    $region76: #{tpu_custom_call.1} parent=1 // pred_region
      _
    $region77: #{tpu_custom_call.1} parent=1 // pred_fallthru
      _
    // Predicated region
    $region78: #{tpu_custom_call.1} parent=1 // pred_check
      _
    $region79: #{tpu_custom_call.1} parent=1 // pred_check_branch
      %265 = sbr.rel (0) target = $region81
    $region80: #{tpu_custom_call.1} parent=1 // pred_region
      %s267 = ssub.s32 256, 256
      %268 = vsyncadd [#allocation27], %s267
      %s269 = sshll.u32 [#allocation28], 4
      %s270 = int_to_ptr.vmem [resolvable:$true] %s269
      %275 = dma.hbm_to_vmem [thread:$0]  %s39, 256, %s270, [#allocation27], 128, 128, 8
    $region81: #{tpu_custom_call.1} parent=1 // pred_fallthru
      _
    // Predicated region
    $region82: #{tpu_custom_call.1} parent=1 // pred_check
      _
    $region83: #{tpu_custom_call.1} parent=1 // pred_check_branch
      %277 = sbr.rel (0) target = $region85
    $region84: #{tpu_custom_call.1} parent=1 // pred_region
      _
    $region85: #{tpu_custom_call.1} parent=1 // pred_fallthru
      _
    // Predicated region
    $region86: #{tpu_custom_call.1} parent=1 // pred_check
      _
    $region87: #{tpu_custom_call.1} parent=1 // pred_check_branch
      %279 = sbr.rel (0) target = $region89
    $region88: #{tpu_custom_call.1} parent=1 // pred_region
      %s281 = ssub.s32 256, 256
      %282 = vsyncadd [#allocation30], %s281
      %s283 = sshll.u32 [#allocation29], 4
      %s284 = int_to_ptr.vmem [resolvable:$true] %s283
      %289 = dma.hbm_to_vmem [thread:$0]  %s43, 256, %s284, [#allocation30], 128, 128, 8
    $region89: #{tpu_custom_call.1} parent=1 // pred_fallthru
      _
    // Predicated region
    $region90: #{tpu_custom_call.1} parent=1 // pred_check
      _
    $region91: #{tpu_custom_call.1} parent=1 // pred_check_branch
      %291 = sbr.rel (0) target = $region93
    $region92: #{tpu_custom_call.1} parent=1 // pred_region
      %s293 = ssub.s32 16, 16
      %294 = vsyncadd [#allocation30], %s293
      %s296 = sshll.u32 [#allocation31], 4
      %s297 = int_to_ptr.vmem [resolvable:$true] %s296
      %299 = dma.hbm_to_vmem [thread:$0]  %s45, 16, %s297, [#allocation30]
    $region93: #{tpu_custom_call.1} parent=1 // pred_fallthru
      _
    // Predicated region
    $region94: #{tpu_custom_call.1} parent=1 // pred_check
      _
    $region95: #{tpu_custom_call.1} parent=1 // pred_check_branch
      %301 = sbr.rel (0) target = $region97
    $region96: #{tpu_custom_call.1} parent=1 // pred_region
      _
    $region97: #{tpu_custom_call.1} parent=1 // pred_fallthru
      _
    // Predicated region
    $region98: #{tpu_custom_call.1} parent=1 // pred_check
      _
    $region99: #{tpu_custom_call.1} parent=1 // pred_check_branch
      %303 = sbr.rel (0) target = $region101
    $region100: #{tpu_custom_call.1} parent=1 // pred_region
      _
    $region101: #{tpu_custom_call.1} parent=1 // pred_fallthru
      _
    // Predicated region
    $region102: #{tpu_custom_call.1} parent=1 // pred_check
      _
    $region103: #{tpu_custom_call.1} parent=1 // pred_check_branch
      %305 = sbr.rel (0) target = $region105
    $region104: #{tpu_custom_call.1} parent=1 // pred_region
      _
    $region105: #{tpu_custom_call.1} parent=1 // pred_fallthru
      _
    // Predicated region
    $region106: #{tpu_custom_call.1} parent=1 // pred_check
      _
    $region107: #{tpu_custom_call.1} parent=1 // pred_check_branch
      %307 = sbr.rel (0) target = $region109
    $region108: #{tpu_custom_call.1} parent=1 // pred_region
      %s309 = ssub.s32 384, 384
      %310 = vsyncadd [#allocation33], %s309
      %s311 = sshll.u32 [#allocation32], 4
      %s312 = int_to_ptr.vmem [resolvable:$true] %s311
      %317 = dma.hbm_to_vmem [thread:$0]  %s53, 384, %s312, [#allocation33], 128, 128, 8
    $region109: #{tpu_custom_call.1} parent=1 // pred_fallthru
      _
    // Predicated region
    $region110: #{tpu_custom_call.1} parent=1 // pred_check
      _
    $region111: #{tpu_custom_call.1} parent=1 // pred_check_branch
      %319 = sbr.rel (0) target = $region113
    $region112: #{tpu_custom_call.1} parent=1 // pred_region
      _
    $region113: #{tpu_custom_call.1} parent=1 // pred_fallthru
      _
    // Predicated region
    $region114: #{tpu_custom_call.1} parent=1 // pred_check
      _
    $region115: #{tpu_custom_call.1} parent=1 // pred_check_branch
      %321 = sbr.rel (0) target = $region117
    $region116: #{tpu_custom_call.1} parent=1 // pred_region
      _
    $region117: #{tpu_custom_call.1} parent=1 // pred_fallthru
      _
    // Predicated region
    $region118: #{tpu_custom_call.1} parent=1 // pred_check
      _
    $region119: #{tpu_custom_call.1} parent=1 // pred_check_branch
      %323 = sbr.rel (0) target = $region121
    $region120: #{tpu_custom_call.1} parent=1 // pred_region
      _
    $region121: #{tpu_custom_call.1} parent=1 // pred_fallthru
      _
    // Predicated region
    $region122: #{tpu_custom_call.1} parent=1 // pred_check
      _
    $region123: #{tpu_custom_call.1} parent=1 // pred_check_branch
      %325 = sbr.rel (0) target = $region125
    $region124: #{tpu_custom_call.1} parent=1 // pred_region
      _
    $region125: #{tpu_custom_call.1} parent=1 // pred_fallthru
      _
    // Predicated region
    $region126: #{tpu_custom_call.1} parent=1 // pred_check
      _
    $region127: #{tpu_custom_call.1} parent=1 // pred_check_branch
      %327 = sbr.rel (0) target = $region129
    $region128: #{tpu_custom_call.1} parent=1 // pred_region
      _
    $region129: #{tpu_custom_call.1} parent=1 // pred_fallthru
      _
    // Predicated region
    $region130: #{tpu_custom_call.1} parent=1 // pred_check
      _
    $region131: #{tpu_custom_call.1} parent=1 // pred_check_branch
      %329 = sbr.rel (0) target = $region133
    $region132: #{tpu_custom_call.1} parent=1 // pred_region
      %330 = dma.done [#allocation3], 256
    $region133: #{tpu_custom_call.1} parent=1 // pred_fallthru
      _
    // Predicated region
    $region134: #{tpu_custom_call.1} parent=1 // pred_check
      _
    $region135: #{tpu_custom_call.1} parent=1 // pred_check_branch
      %332 = sbr.rel (0) target = $region137
    $region136: #{tpu_custom_call.1} parent=1 // pred_region
      %333 = dma.done [#allocation6], 128
    $region137: #{tpu_custom_call.1} parent=1 // pred_fallthru
      _
    // Predicated region
    $region138: #{tpu_custom_call.1} parent=1 // pred_check
      _
    $region139: #{tpu_custom_call.1} parent=1 // pred_check_branch
      %335 = sbr.rel (0) target = $region141
    $region140: #{tpu_custom_call.1} parent=1 // pred_region
      %336 = dma.done [#allocation6], 16
    $region141: #{tpu_custom_call.1} parent=1 // pred_fallthru
      _
    // Predicated region
    $region142: #{tpu_custom_call.1} parent=1 // pred_check
      _
    $region143: #{tpu_custom_call.1} parent=1 // pred_check_branch
      %338 = sbr.rel (0) target = $region145
    $region144: #{tpu_custom_call.1} parent=1 // pred_region
      %339 = dma.done [#allocation9], 256
    $region145: #{tpu_custom_call.1} parent=1 // pred_fallthru
      _
    // Predicated region
    $region146: #{tpu_custom_call.1} parent=1 // pred_check
      _
    $region147: #{tpu_custom_call.1} parent=1 // pred_check_branch
      %341 = sbr.rel (0) target = $region149
    $region148: #{tpu_custom_call.1} parent=1 // pred_region
      %342 = dma.done [#allocation9], 16
    $region149: #{tpu_custom_call.1} parent=1 // pred_fallthru
      _
    // Predicated region
    $region150: #{tpu_custom_call.1} parent=1 // pred_check
      _
    $region151: #{tpu_custom_call.1} parent=1 // pred_check_branch
      %344 = sbr.rel (0) target = $region153
    $region152: #{tpu_custom_call.1} parent=1 // pred_region
      %345 = dma.done [#allocation12], 256
    $region153: #{tpu_custom_call.1} parent=1 // pred_fallthru
      _
    // Predicated region
    $region154: #{tpu_custom_call.1} parent=1 // pred_check
      _
    $region155: #{tpu_custom_call.1} parent=1 // pred_check_branch
      %347 = sbr.rel (0) target = $region157
    $region156: #{tpu_custom_call.1} parent=1 // pred_region
      %348 = dma.done [#allocation12], 16
    $region157: #{tpu_custom_call.1} parent=1 // pred_fallthru
      _
    // Predicated region
    $region158: #{tpu_custom_call.1} parent=1 // pred_check
      _
    $region159: #{tpu_custom_call.1} parent=1 // pred_check_branch
      %350 = sbr.rel (0) target = $region161
    $region160: #{tpu_custom_call.1} parent=1 // pred_region
      %351 = dma.done [#allocation15], 256
    $region161: #{tpu_custom_call.1} parent=1 // pred_fallthru
      _
    // Predicated region
    $region162: #{tpu_custom_call.1} parent=1 // pred_check
      _
    $region163: #{tpu_custom_call.1} parent=1 // pred_check_branch
      %353 = sbr.rel (0) target = $region165
    $region164: #{tpu_custom_call.1} parent=1 // pred_region
      %354 = dma.done [#allocation15], 16
    $region165: #{tpu_custom_call.1} parent=1 // pred_fallthru
      _
    // Predicated region
    $region166: #{tpu_custom_call.1} parent=1 // pred_check
      _
    $region167: #{tpu_custom_call.1} parent=1 // pred_check_branch
      %356 = sbr.rel (0) target = $region169
    $region168: #{tpu_custom_call.1} parent=1 // pred_region
      %357 = dma.done [#allocation18], 256
    $region169: #{tpu_custom_call.1} parent=1 // pred_fallthru
      _
    // Predicated region
    $region170: #{tpu_custom_call.1} parent=1 // pred_check
      _
    $region171: #{tpu_custom_call.1} parent=1 // pred_check_branch
      %359 = sbr.rel (0) target = $region173
    $region172: #{tpu_custom_call.1} parent=1 // pred_region
      %360 = dma.done [#allocation18], 16
    $region173: #{tpu_custom_call.1} parent=1 // pred_fallthru
      _
    // Predicated region
    $region174: #{tpu_custom_call.1} parent=1 // pred_check
      _
    $region175: #{tpu_custom_call.1} parent=1 // pred_check_branch
      %362 = sbr.rel (0) target = $region177
    $region176: #{tpu_custom_call.1} parent=1 // pred_region
      %363 = dma.done [#allocation21], 256
    $region177: #{tpu_custom_call.1} parent=1 // pred_fallthru
      _
    // Predicated region
    $region178: #{tpu_custom_call.1} parent=1 // pred_check
      _
    $region179: #{tpu_custom_call.1} parent=1 // pred_check_branch
      %365 = sbr.rel (0) target = $region181
    $region180: #{tpu_custom_call.1} parent=1 // pred_region
      %366 = dma.done [#allocation21], 16
    $region181: #{tpu_custom_call.1} parent=1 // pred_fallthru
      _
    // Predicated region
    $region182: #{tpu_custom_call.1} parent=1 // pred_check
      _
    $region183: #{tpu_custom_call.1} parent=1 // pred_check_branch
      %368 = sbr.rel (0) target = $region185
    $region184: #{tpu_custom_call.1} parent=1 // pred_region
      %369 = dma.done [#allocation24], 256
    $region185: #{tpu_custom_call.1} parent=1 // pred_fallthru
      _
    // Predicated region
    $region186: #{tpu_custom_call.1} parent=1 // pred_check
      _
    $region187: #{tpu_custom_call.1} parent=1 // pred_check_branch
      %371 = sbr.rel (0) target = $region189
    $region188: #{tpu_custom_call.1} parent=1 // pred_region
      %372 = dma.done [#allocation24], 16
    $region189: #{tpu_custom_call.1} parent=1 // pred_fallthru
      _
    // Predicated region
    $region190: #{tpu_custom_call.1} parent=1 // pred_check
      _
    $region191: #{tpu_custom_call.1} parent=1 // pred_check_branch
      %374 = sbr.rel (0) target = $region193
    $region192: #{tpu_custom_call.1} parent=1 // pred_region
      %375 = dma.done [#allocation27], 256
    $region193: #{tpu_custom_call.1} parent=1 // pred_fallthru
      _
    // Predicated region
    $region194: #{tpu_custom_call.1} parent=1 // pred_check
      _
    $region195: #{tpu_custom_call.1} parent=1 // pred_check_branch
      %377 = sbr.rel (0) target = $region197
    $region196: #{tpu_custom_call.1} parent=1 // pred_region
      %378 = dma.done [#allocation27], 256
    $region197: #{tpu_custom_call.1} parent=1 // pred_fallthru
      _
    // Predicated region
    $region198: #{tpu_custom_call.1} parent=1 // pred_check
      _
    $region199: #{tpu_custom_call.1} parent=1 // pred_check_branch
      %380 = sbr.rel (0) target = $region201
    $region200: #{tpu_custom_call.1} parent=1 // pred_region
      %381 = dma.done [#allocation30], 256
    $region201: #{tpu_custom_call.1} parent=1 // pred_fallthru
      _
    // Predicated region
    $region202: #{tpu_custom_call.1} parent=1 // pred_check
      _
    $region203: #{tpu_custom_call.1} parent=1 // pred_check_branch
      %383 = sbr.rel (0) target = $region205
    $region204: #{tpu_custom_call.1} parent=1 // pred_region
      %384 = dma.done [#allocation30], 16
    $region205: #{tpu_custom_call.1} parent=1 // pred_fallthru
      _
    // Predicated region
    $region206: #{tpu_custom_call.1} parent=1 // pred_check
      _
    $region207: #{tpu_custom_call.1} parent=1 // pred_check_branch
      %386 = sbr.rel (0) target = $region209
    $region208: #{tpu_custom_call.1} parent=1 // pred_region
      %387 = dma.done [#allocation33], 384
    $region209: #{tpu_custom_call.1} parent=1 // pred_fallthru
      _
    %v388 = vld [vmem:[#allocation2] sm:$0xff]
    %v389 = vld [vmem:[#allocation2 + $0x8] sm:$0xff]
    %v390 = vld [vmem:[%s3] sm:$0xff]
    %v391 = vld [vmem:[%s3 + $0x8] sm:$0xff]
    %v392 = vld [vmem:[%s5] sm:$0xff]
    %v393 = vld [vmem:[%s5 + $0x8] sm:$0xff]
    %v394 = vld [vmem:[#allocation5] sm:$0xff]
    %v395 = vld [vmem:[#allocation7] sm:$0x1]
    %v396 = vld [vmem:[#allocation8] sm:$0xff]
    %v397 = vld [vmem:[#allocation8 + $0x8] sm:$0xff]
    %v398 = vld [vmem:[#allocation10] sm:$0x1]
    %vm399 = vcmask 130048
    %v401 = vsel %vm399, %v388, 0
    %v404 = vsel %vm399, %v389, 0
    %406 = vmatprep.subr.mxu0 0.0
    %407 = vmatpush1.msra.mxu0 %v390
    %408 = vmatprep.subr.mxu0 0.0
    %409 = vmatpush1.msra.mxu0 %v391
    %410 = vmatprep.subr.mxu0 0.0
    %411 = vmatpush1.msra.mxu0 0.0
    %412 = vmatprep.subr.mxu0 0.0
    %413 = vmatpush1.msra.mxu0 0.0
    %414 = vmatprep.subr.mxu0 0.0
    %415 = vmatpush1.msra.mxu0 0.0
    %416 = vmatprep.subr.mxu0 0.0
    %417 = vmatpush1.msra.mxu0 0.0
    %418 = vmatprep.subr.mxu0 0.0
    %419 = vmatpush1.msra.mxu0 0.0
    %420 = vmatprep.subr.mxu0 0.0
    %421 = vmatpush1.msra.mxu0 0.0
    %422 = vmatprep.subr.mxu0 0.0
    %423 = vmatpush1.msra.mxu0 0.0
    %424 = vmatprep.subr.mxu0 0.0
    %425 = vmatpush1.msra.mxu0 0.0
    %426 = vmatprep.subr.mxu0 0.0
    %427 = vmatpush1.msra.mxu0 0.0
    %428 = vmatprep.subr.mxu0 0.0
    %429 = vmatpush1.msra.mxu0 0.0
    %430 = vmatprep.subr.mxu0 0.0
    %431 = vmatpush1.msra.mxu0 0.0
    %432 = vmatprep.subr.mxu0 0.0
    %433 = vmatpush1.msra.mxu0 0.0
    %434 = vmatprep.subr.mxu0 0.0
    %435 = vmatpush1.msra.mxu0 0.0
    %436 = vmatprep.subr.mxu0 0.0
    %437 = vmatpush1.msra.mxu0 0.0
    %438 = vmatprep.subr.mxu0 0.0
    %439 = vmatpush1.msra.mxu0 0.0
    %440 = vmatprep.subr.mxu0 0.0
    %441 = vmatpush1.msra.mxu0 0.0
    %442 = vmatprep.subr.mxu0 0.0
    %443 = vmatpush1.msra.mxu0 0.0
    %444 = vmatprep.subr.mxu0 0.0
    %445 = vmatpush1.msra.mxu0 0.0
    %446 = vmatprep.subr.mxu0 0.0
    %447 = vmatpush1.msra.mxu0 0.0
    %448 = vmatprep.subr.mxu0 0.0
    %449 = vmatpush1.msra.mxu0 0.0
    %450 = vmatprep.subr.mxu0 0.0
    %451 = vmatpush1.msra.mxu0 0.0
    %452 = vmatprep.subr.mxu0 0.0
    %453 = vmatpush1.msra.mxu0 0.0
    %454 = vmatprep.subr.mxu0 0.0
    %455 = vmatpush1.msra.mxu0 0.0
    %456 = vmatprep.subr.mxu0 0.0
    %457 = vmatpush1.msra.mxu0 0.0
    %458 = vmatprep.subr.mxu0 0.0
    %459 = vmatpush1.msra.mxu0 0.0
    %460 = vmatprep.subr.mxu0 0.0
    %461 = vmatpush1.msra.mxu0 0.0
    %462 = vmatprep.subr.mxu0 0.0
    %463 = vmatpush1.msra.mxu0 0.0
    %464 = vmatprep.subr.mxu0 0.0
    %465 = vmatpush1.msra.mxu0 0.0
    %466 = vmatprep.subr.mxu0 0.0
    %467 = vmatpush1.msra.mxu0 0.0
    %468 = vmatprep.subr.mxu0 0.0
    %469 = vmatpush1.msra.mxu0 0.0
    %470 = vmatprep.mubr.f32.mxu0 0.0
    %471 = vmatmul.mubr.f32.gmra.mrb[0].mxu0 %v401
    %v472 = vpop.f32.mrb[0].mxu0
    %v473 = vadd.f32 %v392, %v472
    %v474 = vpop.f32.mrb[0].mxu0
    %475 = vmatprep.mubr.f32.mxu0 0.0
    %476 = vmatmul.mubr.f32.gmra.mrb[0].mxu0 %v404
    %v477 = vpop.f32.mrb[0].mxu0
    %v478 = vadd.f32 %v393, %v477
    %v479 = vpop.f32.mrb[0].mxu0
    %480 = vdwg.mxu0
    %v482 = vlaneseq
    %v483 = vshrl.u32 %v482, 7
    %v484 = vsub.s32 0, %v483
    %v485 = vrot.slane %v395, %v484
    %vm487 = vcmask 64512
    %v489 = vsel %vm487, %v473, 0
    %v492 = vsel %vm487, %v478, 0
    %494 = vmatprep.subr.mxu0 0.0
    %495 = vmatpush1.msra.mxu0 %v394
    %496 = vmatprep.subr.mxu0 0.0
    %497 = vmatpush1.msra.mxu0 0.0
    %498 = vmatprep.subr.mxu0 0.0
    %499 = vmatpush1.msra.mxu0 0.0
    %500 = vmatprep.subr.mxu0 0.0
    %501 = vmatpush1.msra.mxu0 0.0
    %502 = vmatprep.subr.mxu0 0.0
    %503 = vmatpush1.msra.mxu0 0.0
    %504 = vmatprep.subr.mxu0 0.0
    %505 = vmatpush1.msra.mxu0 0.0
    %506 = vmatprep.subr.mxu0 0.0
    %507 = vmatpush1.msra.mxu0 0.0
    %508 = vmatprep.subr.mxu0 0.0
    %509 = vmatpush1.msra.mxu0 0.0
    %510 = vmatprep.subr.mxu0 0.0
    %511 = vmatpush1.msra.mxu0 0.0
    %512 = vmatprep.subr.mxu0 0.0
    %513 = vmatpush1.msra.mxu0 0.0
    %514 = vmatprep.subr.mxu0 0.0
    %515 = vmatpush1.msra.mxu0 0.0
    %516 = vmatprep.subr.mxu0 0.0
    %517 = vmatpush1.msra.mxu0 0.0
    %518 = vmatprep.subr.mxu0 0.0
    %519 = vmatpush1.msra.mxu0 0.0
    %520 = vmatprep.subr.mxu0 0.0
    %521 = vmatpush1.msra.mxu0 0.0
    %522 = vmatprep.subr.mxu0 0.0
    %523 = vmatpush1.msra.mxu0 0.0
    %524 = vmatprep.subr.mxu0 0.0
    %525 = vmatpush1.msra.mxu0 0.0
    %526 = vmatprep.subr.mxu0 0.0
    %527 = vmatpush1.msra.mxu0 0.0
    %528 = vmatprep.subr.mxu0 0.0
    %529 = vmatpush1.msra.mxu0 0.0
    %530 = vmatprep.subr.mxu0 0.0
    %531 = vmatpush1.msra.mxu0 0.0
    %532 = vmatprep.subr.mxu0 0.0
    %533 = vmatpush1.msra.mxu0 0.0
    %534 = vmatprep.subr.mxu0 0.0
    %535 = vmatpush1.msra.mxu0 0.0
    %536 = vmatprep.subr.mxu0 0.0
    %537 = vmatpush1.msra.mxu0 0.0
    %538 = vmatprep.subr.mxu0 0.0
    %539 = vmatpush1.msra.mxu0 0.0
    %540 = vmatprep.subr.mxu0 0.0
    %541 = vmatpush1.msra.mxu0 0.0
    %542 = vmatprep.subr.mxu0 0.0
    %543 = vmatpush1.msra.mxu0 0.0
    %544 = vmatprep.subr.mxu0 0.0
    %545 = vmatpush1.msra.mxu0 0.0
    %546 = vmatprep.subr.mxu0 0.0
    %547 = vmatpush1.msra.mxu0 0.0
    %548 = vmatprep.subr.mxu0 0.0
    %549 = vmatpush1.msra.mxu0 0.0
    %550 = vmatprep.subr.mxu0 0.0
    %551 = vmatpush1.msra.mxu0 0.0
    %552 = vmatprep.subr.mxu0 0.0
    %553 = vmatpush1.msra.mxu0 0.0
    %554 = vmatprep.subr.mxu0 0.0
    %555 = vmatpush1.msra.mxu0 0.0
    %556 = vmatprep.subr.mxu0 0.0
    %557 = vmatpush1.msra.mxu0 0.0
    %558 = vmatprep.mubr.f32.mxu0 0.0
    %559 = vmatmul.mubr.f32.gmra.mrb[0].mxu0 %v489
    %v560 = vpop.f32.mrb[0].mxu0
    %v561 = vadd.f32 %v485, %v560
    %v562 = vpop.f32.mrb[0].mxu0
    %563 = vmatprep.mubr.f32.mxu0 0.0
    %564 = vmatmul.mubr.f32.gmra.mrb[0].mxu0 %v492
    %v565 = vpop.f32.mrb[0].mxu0
    %v566 = vadd.f32 %v485, %v565
    %v567 = vpop.f32.mrb[0].mxu0
    %568 = vdwg.mxu0
    %v569 = vmax.f32 %v561, 0.0
    %v570 = vmax.f32 %v566, 0.0
    %v572 = vlaneseq
    %v573 = vshrl.u32 %v572, 7
    %v574 = vsub.s32 0, %v573
    %v575 = vrot.slane %v398, %v574
    %v578 = vsel %vm399, %v569, 0
    %v581 = vsel %vm399, %v570, 0
    %583 = vmatprep.subr.mxu0 0.0
    %584 = vmatpush1.msra.mxu0 %v396
    %585 = vmatprep.subr.mxu0 0.0
    %586 = vmatpush1.msra.mxu0 %v397
    %587 = vmatprep.subr.mxu0 0.0
    %588 = vmatpush1.msra.mxu0 0.0
    %589 = vmatprep.subr.mxu0 0.0
    %590 = vmatpush1.msra.mxu0 0.0
    %591 = vmatprep.subr.mxu0 0.0
    %592 = vmatpush1.msra.mxu0 0.0
    %593 = vmatprep.subr.mxu0 0.0
    %594 = vmatpush1.msra.mxu0 0.0
    %595 = vmatprep.subr.mxu0 0.0
    %596 = vmatpush1.msra.mxu0 0.0
    %597 = vmatprep.subr.mxu0 0.0
    %598 = vmatpush1.msra.mxu0 0.0
    %599 = vmatprep.subr.mxu0 0.0
    %600 = vmatpush1.msra.mxu0 0.0
    %601 = vmatprep.subr.mxu0 0.0
    %602 = vmatpush1.msra.mxu0 0.0
    %603 = vmatprep.subr.mxu0 0.0
    %604 = vmatpush1.msra.mxu0 0.0
    %605 = vmatprep.subr.mxu0 0.0
    %606 = vmatpush1.msra.mxu0 0.0
    %607 = vmatprep.subr.mxu0 0.0
    %608 = vmatpush1.msra.mxu0 0.0
    %609 = vmatprep.subr.mxu0 0.0
    %610 = vmatpush1.msra.mxu0 0.0
    %611 = vmatprep.subr.mxu0 0.0
    %612 = vmatpush1.msra.mxu0 0.0
    %613 = vmatprep.subr.mxu0 0.0
    %614 = vmatpush1.msra.mxu0 0.0
    %615 = vmatprep.subr.mxu0 0.0
    %616 = vmatpush1.msra.mxu0 0.0
    %617 = vmatprep.subr.mxu0 0.0
    %618 = vmatpush1.msra.mxu0 0.0
    %619 = vmatprep.subr.mxu0 0.0
    %620 = vmatpush1.msra.mxu0 0.0
    %621 = vmatprep.subr.mxu0 0.0
    %622 = vmatpush1.msra.mxu0 0.0
    %623 = vmatprep.subr.mxu0 0.0
    %624 = vmatpush1.msra.mxu0 0.0
    %625 = vmatprep.subr.mxu0 0.0
    %626 = vmatpush1.msra.mxu0 0.0
    %627 = vmatprep.subr.mxu0 0.0
    %628 = vmatpush1.msra.mxu0 0.0
    %629 = vmatprep.subr.mxu0 0.0
    %630 = vmatpush1.msra.mxu0 0.0
    %631 = vmatprep.subr.mxu0 0.0
    %632 = vmatpush1.msra.mxu0 0.0
    %633 = vmatprep.subr.mxu0 0.0
    %634 = vmatpush1.msra.mxu0 0.0
    %635 = vmatprep.subr.mxu0 0.0
    %636 = vmatpush1.msra.mxu0 0.0
    %637 = vmatprep.subr.mxu0 0.0
    %638 = vmatpush1.msra.mxu0 0.0
    %639 = vmatprep.subr.mxu0 0.0
    %640 = vmatpush1.msra.mxu0 0.0
    %641 = vmatprep.subr.mxu0 0.0
    %642 = vmatpush1.msra.mxu0 0.0
    %643 = vmatprep.subr.mxu0 0.0
    %644 = vmatpush1.msra.mxu0 0.0
    %645 = vmatprep.subr.mxu0 0.0
    %646 = vmatpush1.msra.mxu0 0.0
    %647 = vmatprep.mubr.f32.mxu0 0.0
    %648 = vmatmul.mubr.f32.gmra.mrb[0].mxu0 %v578
    %v649 = vpop.f32.mrb[0].mxu0
    %v650 = vadd.f32 %v575, %v649
    %v651 = vpop.f32.mrb[0].mxu0
    %652 = vmatprep.mubr.f32.mxu0 0.0
    %653 = vmatmul.mubr.f32.gmra.mrb[0].mxu0 %v581
    %v654 = vpop.f32.mrb[0].mxu0
    %v655 = vadd.f32 %v575, %v654
    %v656 = vpop.f32.mrb[0].mxu0
    %657 = vdwg.mxu0
    %v658 = vmax.f32 %v650, 0.0
    %v659 = vmax.f32 %v655, 0.0
    %v660 = vld [vmem:[#allocation11] sm:$0xff]
    %v661 = vld [vmem:[#allocation11 + $0x8] sm:$0xff]
    %v662 = vld [vmem:[#allocation13] sm:$0x1]
    %v663 = vld [vmem:[#allocation14] sm:$0xff]
    %v664 = vld [vmem:[#allocation14 + $0x8] sm:$0xff]
    %v665 = vld [vmem:[#allocation16] sm:$0x1]
    %666 = vmatprep.subr.mxu0 0.0
    %667 = vmatpush1.msra.mxu0 %v658
    %668 = vmatprep.subr.mxu0 0.0
    %669 = vmatpush1.msra.mxu0 %v659
    %670 = vmatprep.subr.mxu0 0.0
    %671 = vmatpush1.msra.mxu0 0.0
    %672 = vmatprep.subr.mxu0 0.0
    %673 = vmatpush1.msra.mxu0 0.0
    %674 = vmatprep.subr.mxu0 0.0
    %675 = vmatpush1.msra.mxu0 0.0
    %676 = vmatprep.subr.mxu0 0.0
    %677 = vmatpush1.msra.mxu0 0.0
    %678 = vmatprep.subr.mxu0 0.0
    %679 = vmatpush1.msra.mxu0 0.0
    %680 = vmatprep.subr.mxu0 0.0
    %681 = vmatpush1.msra.mxu0 0.0
    %682 = vmatprep.subr.mxu0 0.0
    %683 = vmatpush1.msra.mxu0 0.0
    %684 = vmatprep.subr.mxu0 0.0
    %685 = vmatpush1.msra.mxu0 0.0
    %686 = vmatprep.subr.mxu0 0.0
    %687 = vmatpush1.msra.mxu0 0.0
    %688 = vmatprep.subr.mxu0 0.0
    %689 = vmatpush1.msra.mxu0 0.0
    %690 = vmatprep.subr.mxu0 0.0
    %691 = vmatpush1.msra.mxu0 0.0
    %692 = vmatprep.subr.mxu0 0.0
    %693 = vmatpush1.msra.mxu0 0.0
    %694 = vmatprep.subr.mxu0 0.0
    %695 = vmatpush1.msra.mxu0 0.0
    %696 = vmatprep.subr.mxu0 0.0
    %697 = vmatpush1.msra.mxu0 0.0
    %698 = vmatprep.subr.mxu0 0.0
    %699 = vmatpush1.msra.mxu0 0.0
    %700 = vmatprep.subr.mxu0 0.0
    %701 = vmatpush1.msra.mxu0 0.0
    %702 = vmatprep.subr.mxu0 0.0
    %703 = vmatpush1.msra.mxu0 0.0
    %704 = vmatprep.subr.mxu0 0.0
    %705 = vmatpush1.msra.mxu0 0.0
    %706 = vmatprep.subr.mxu0 0.0
    %707 = vmatpush1.msra.mxu0 0.0
    %708 = vmatprep.subr.mxu0 0.0
    %709 = vmatpush1.msra.mxu0 0.0
    %710 = vmatprep.subr.mxu0 0.0
    %711 = vmatpush1.msra.mxu0 0.0
    %712 = vmatprep.subr.mxu0 0.0
    %713 = vmatpush1.msra.mxu0 0.0
    %714 = vmatprep.subr.mxu0 0.0
    %715 = vmatpush1.msra.mxu0 0.0
    %716 = vmatprep.subr.mxu0 0.0
    %717 = vmatpush1.msra.mxu0 0.0
    %718 = vmatprep.subr.mxu0 0.0
    %719 = vmatpush1.msra.mxu0 0.0
    %720 = vmatprep.subr.mxu0 0.0
    %721 = vmatpush1.msra.mxu0 0.0
    %722 = vmatprep.subr.mxu0 0.0
    %723 = vmatpush1.msra.mxu0 0.0
    %724 = vmatprep.subr.mxu0 0.0
    %725 = vmatpush1.msra.mxu0 0.0
    %726 = vmatprep.subr.mxu0 0.0
    %727 = vmatpush1.msra.mxu0 0.0
    %728 = vmatprep.subr.mxu0 0.0
    %729 = vmatpush1.msra.mxu0 0.0
    %730 = vmatprep.mubr.f32.mxu0 0.0
    %731 = vmatmul.mubr.f32.gmra.mrb[0].mxu0 %v401
    %v732 = vpop.f32.mrb[0].mxu0
    %v733 = vadd.f32 0.0, %v732
    %v734 = vpop.f32.mrb[0].mxu0
    %735 = vmatprep.mubr.f32.mxu0 0.0
    %736 = vmatmul.mubr.f32.gmra.mrb[0].mxu0 %v404
    %v737 = vpop.f32.mrb[0].mxu0
    %v738 = vadd.f32 0.0, %v737
    %v739 = vpop.f32.mrb[0].mxu0
    %740 = vdwg.mxu0
    %v742 = vlaneseq
    %v743 = vshrl.u32 %v742, 7
    %v744 = vsub.s32 0, %v743
    %v745 = vrot.slane %v662, %v744
    %v748 = vsel %vm399, %v733, 0
    %v751 = vsel %vm399, %v738, 0
    %753 = vmatprep.subr.mxu0 0.0
    %754 = vmatpush1.msra.mxu0 %v660
    %755 = vmatprep.subr.mxu0 0.0
    %756 = vmatpush1.msra.mxu0 %v661
    %757 = vmatprep.subr.mxu0 0.0
    %758 = vmatpush1.msra.mxu0 0.0
    %759 = vmatprep.subr.mxu0 0.0
    %760 = vmatpush1.msra.mxu0 0.0
    %761 = vmatprep.subr.mxu0 0.0
    %762 = vmatpush1.msra.mxu0 0.0
    %763 = vmatprep.subr.mxu0 0.0
    %764 = vmatpush1.msra.mxu0 0.0
    %765 = vmatprep.subr.mxu0 0.0
    %766 = vmatpush1.msra.mxu0 0.0
    %767 = vmatprep.subr.mxu0 0.0
    %768 = vmatpush1.msra.mxu0 0.0
    %769 = vmatprep.subr.mxu0 0.0
    %770 = vmatpush1.msra.mxu0 0.0
    %771 = vmatprep.subr.mxu0 0.0
    %772 = vmatpush1.msra.mxu0 0.0
    %773 = vmatprep.subr.mxu0 0.0
    %774 = vmatpush1.msra.mxu0 0.0
    %775 = vmatprep.subr.mxu0 0.0
    %776 = vmatpush1.msra.mxu0 0.0
    %777 = vmatprep.subr.mxu0 0.0
    %778 = vmatpush1.msra.mxu0 0.0
    %779 = vmatprep.subr.mxu0 0.0
    %780 = vmatpush1.msra.mxu0 0.0
    %781 = vmatprep.subr.mxu0 0.0
    %782 = vmatpush1.msra.mxu0 0.0
    %783 = vmatprep.subr.mxu0 0.0
    %784 = vmatpush1.msra.mxu0 0.0
    %785 = vmatprep.subr.mxu0 0.0
    %786 = vmatpush1.msra.mxu0 0.0
    %787 = vmatprep.subr.mxu0 0.0
    %788 = vmatpush1.msra.mxu0 0.0
    %789 = vmatprep.subr.mxu0 0.0
    %790 = vmatpush1.msra.mxu0 0.0
    %791 = vmatprep.subr.mxu0 0.0
    %792 = vmatpush1.msra.mxu0 0.0
    %793 = vmatprep.subr.mxu0 0.0
    %794 = vmatpush1.msra.mxu0 0.0
    %795 = vmatprep.subr.mxu0 0.0
    %796 = vmatpush1.msra.mxu0 0.0
    %797 = vmatprep.subr.mxu0 0.0
    %798 = vmatpush1.msra.mxu0 0.0
    %799 = vmatprep.subr.mxu0 0.0
    %800 = vmatpush1.msra.mxu0 0.0
    %801 = vmatprep.subr.mxu0 0.0
    %802 = vmatpush1.msra.mxu0 0.0
    %803 = vmatprep.subr.mxu0 0.0
    %804 = vmatpush1.msra.mxu0 0.0
    %805 = vmatprep.subr.mxu0 0.0
    %806 = vmatpush1.msra.mxu0 0.0
    %807 = vmatprep.subr.mxu0 0.0
    %808 = vmatpush1.msra.mxu0 0.0
    %809 = vmatprep.subr.mxu0 0.0
    %810 = vmatpush1.msra.mxu0 0.0
    %811 = vmatprep.subr.mxu0 0.0
    %812 = vmatpush1.msra.mxu0 0.0
    %813 = vmatprep.subr.mxu0 0.0
    %814 = vmatpush1.msra.mxu0 0.0
    %815 = vmatprep.subr.mxu0 0.0
    %816 = vmatpush1.msra.mxu0 0.0
    %817 = vmatprep.mubr.f32.mxu0 0.0
    %818 = vmatmul.mubr.f32.gmra.mrb[0].mxu0 %v748
    %v819 = vpop.f32.mrb[0].mxu0
    %v820 = vadd.f32 %v745, %v819
    %v821 = vpop.f32.mrb[0].mxu0
    %822 = vmatprep.mubr.f32.mxu0 0.0
    %823 = vmatmul.mubr.f32.gmra.mrb[0].mxu0 %v751
    %v824 = vpop.f32.mrb[0].mxu0
    %v825 = vadd.f32 %v745, %v824
    %v826 = vpop.f32.mrb[0].mxu0
    %827 = vdwg.mxu0
    %v828 = vmax.f32 %v820, 0.0
    %v829 = vmax.f32 %v825, 0.0
    %v831 = vlaneseq
    %v832 = vshrl.u32 %v831, 7
    %v833 = vsub.s32 0, %v832
    %v834 = vrot.slane %v665, %v833
    %v837 = vsel %vm399, %v828, 0
    %v840 = vsel %vm399, %v829, 0
    %842 = vmatprep.subr.mxu0 0.0
    %843 = vmatpush1.msra.mxu0 %v663
    %844 = vmatprep.subr.mxu0 0.0
    %845 = vmatpush1.msra.mxu0 %v664
    %846 = vmatprep.subr.mxu0 0.0
    %847 = vmatpush1.msra.mxu0 0.0
    %848 = vmatprep.subr.mxu0 0.0
    %849 = vmatpush1.msra.mxu0 0.0
    %850 = vmatprep.subr.mxu0 0.0
    %851 = vmatpush1.msra.mxu0 0.0
    %852 = vmatprep.subr.mxu0 0.0
    %853 = vmatpush1.msra.mxu0 0.0
    %854 = vmatprep.subr.mxu0 0.0
    %855 = vmatpush1.msra.mxu0 0.0
    %856 = vmatprep.subr.mxu0 0.0
    %857 = vmatpush1.msra.mxu0 0.0
    %858 = vmatprep.subr.mxu0 0.0
    %859 = vmatpush1.msra.mxu0 0.0
    %860 = vmatprep.subr.mxu0 0.0
    %861 = vmatpush1.msra.mxu0 0.0
    %862 = vmatprep.subr.mxu0 0.0
    %863 = vmatpush1.msra.mxu0 0.0
    %864 = vmatprep.subr.mxu0 0.0
    %865 = vmatpush1.msra.mxu0 0.0
    %866 = vmatprep.subr.mxu0 0.0
    %867 = vmatpush1.msra.mxu0 0.0
    %868 = vmatprep.subr.mxu0 0.0
    %869 = vmatpush1.msra.mxu0 0.0
    %870 = vmatprep.subr.mxu0 0.0
    %871 = vmatpush1.msra.mxu0 0.0
    %872 = vmatprep.subr.mxu0 0.0
    %873 = vmatpush1.msra.mxu0 0.0
    %874 = vmatprep.subr.mxu0 0.0
    %875 = vmatpush1.msra.mxu0 0.0
    %876 = vmatprep.subr.mxu0 0.0
    %877 = vmatpush1.msra.mxu0 0.0
    %878 = vmatprep.subr.mxu0 0.0
    %879 = vmatpush1.msra.mxu0 0.0
    %880 = vmatprep.subr.mxu0 0.0
    %881 = vmatpush1.msra.mxu0 0.0
    %882 = vmatprep.subr.mxu0 0.0
    %883 = vmatpush1.msra.mxu0 0.0
    %884 = vmatprep.subr.mxu0 0.0
    %885 = vmatpush1.msra.mxu0 0.0
    %886 = vmatprep.subr.mxu0 0.0
    %887 = vmatpush1.msra.mxu0 0.0
    %888 = vmatprep.subr.mxu0 0.0
    %889 = vmatpush1.msra.mxu0 0.0
    %890 = vmatprep.subr.mxu0 0.0
    %891 = vmatpush1.msra.mxu0 0.0
    %892 = vmatprep.subr.mxu0 0.0
    %893 = vmatpush1.msra.mxu0 0.0
    %894 = vmatprep.subr.mxu0 0.0
    %895 = vmatpush1.msra.mxu0 0.0
    %896 = vmatprep.subr.mxu0 0.0
    %897 = vmatpush1.msra.mxu0 0.0
    %898 = vmatprep.subr.mxu0 0.0
    %899 = vmatpush1.msra.mxu0 0.0
    %900 = vmatprep.subr.mxu0 0.0
    %901 = vmatpush1.msra.mxu0 0.0
    %902 = vmatprep.subr.mxu0 0.0
    %903 = vmatpush1.msra.mxu0 0.0
    %904 = vmatprep.subr.mxu0 0.0
    %905 = vmatpush1.msra.mxu0 0.0
    %906 = vmatprep.mubr.f32.mxu0 0.0
    %907 = vmatmul.mubr.f32.gmra.mrb[0].mxu0 %v837
    %v908 = vpop.f32.mrb[0].mxu0
    %v909 = vadd.f32 %v834, %v908
    %v910 = vpop.f32.mrb[0].mxu0
    %911 = vmatprep.mubr.f32.mxu0 0.0
    %912 = vmatmul.mubr.f32.gmra.mrb[0].mxu0 %v840
    %v913 = vpop.f32.mrb[0].mxu0
    %v914 = vadd.f32 %v834, %v913
    %v915 = vpop.f32.mrb[0].mxu0
    %916 = vdwg.mxu0
    %v917 = vmax.f32 %v909, 0.0
    %v918 = vmax.f32 %v914, 0.0
    %v919 = vld [vmem:[#allocation17] sm:$0xff]
    %v920 = vld [vmem:[#allocation17 + $0x8] sm:$0xff]
    %v921 = vld [vmem:[#allocation19] sm:$0x1]
    %v922 = vld [vmem:[#allocation20] sm:$0xff]
    %v923 = vld [vmem:[#allocation20 + $0x8] sm:$0xff]
    %v924 = vld [vmem:[#allocation22] sm:$0x1]
    %925 = vmatprep.subr.mxu0 0.0
    %926 = vmatpush1.msra.mxu0 %v917
    %927 = vmatprep.subr.mxu0 0.0
    %928 = vmatpush1.msra.mxu0 %v918
    %929 = vmatprep.subr.mxu0 0.0
    %930 = vmatpush1.msra.mxu0 0.0
    %931 = vmatprep.subr.mxu0 0.0
    %932 = vmatpush1.msra.mxu0 0.0
    %933 = vmatprep.subr.mxu0 0.0
    %934 = vmatpush1.msra.mxu0 0.0
    %935 = vmatprep.subr.mxu0 0.0
    %936 = vmatpush1.msra.mxu0 0.0
    %937 = vmatprep.subr.mxu0 0.0
    %938 = vmatpush1.msra.mxu0 0.0
    %939 = vmatprep.subr.mxu0 0.0
    %940 = vmatpush1.msra.mxu0 0.0
    %941 = vmatprep.subr.mxu0 0.0
    %942 = vmatpush1.msra.mxu0 0.0
    %943 = vmatprep.subr.mxu0 0.0
    %944 = vmatpush1.msra.mxu0 0.0
    %945 = vmatprep.subr.mxu0 0.0
    %946 = vmatpush1.msra.mxu0 0.0
    %947 = vmatprep.subr.mxu0 0.0
    %948 = vmatpush1.msra.mxu0 0.0
    %949 = vmatprep.subr.mxu0 0.0
    %950 = vmatpush1.msra.mxu0 0.0
    %951 = vmatprep.subr.mxu0 0.0
    %952 = vmatpush1.msra.mxu0 0.0
    %953 = vmatprep.subr.mxu0 0.0
    %954 = vmatpush1.msra.mxu0 0.0
    %955 = vmatprep.subr.mxu0 0.0
    %956 = vmatpush1.msra.mxu0 0.0
    %957 = vmatprep.subr.mxu0 0.0
    %958 = vmatpush1.msra.mxu0 0.0
    %959 = vmatprep.subr.mxu0 0.0
    %960 = vmatpush1.msra.mxu0 0.0
    %961 = vmatprep.subr.mxu0 0.0
    %962 = vmatpush1.msra.mxu0 0.0
    %963 = vmatprep.subr.mxu0 0.0
    %964 = vmatpush1.msra.mxu0 0.0
    %965 = vmatprep.subr.mxu0 0.0
    %966 = vmatpush1.msra.mxu0 0.0
    %967 = vmatprep.subr.mxu0 0.0
    %968 = vmatpush1.msra.mxu0 0.0
    %969 = vmatprep.subr.mxu0 0.0
    %970 = vmatpush1.msra.mxu0 0.0
    %971 = vmatprep.subr.mxu0 0.0
    %972 = vmatpush1.msra.mxu0 0.0
    %973 = vmatprep.subr.mxu0 0.0
    %974 = vmatpush1.msra.mxu0 0.0
    %975 = vmatprep.subr.mxu0 0.0
    %976 = vmatpush1.msra.mxu0 0.0
    %977 = vmatprep.subr.mxu0 0.0
    %978 = vmatpush1.msra.mxu0 0.0
    %979 = vmatprep.subr.mxu0 0.0
    %980 = vmatpush1.msra.mxu0 0.0
    %981 = vmatprep.subr.mxu0 0.0
    %982 = vmatpush1.msra.mxu0 0.0
    %983 = vmatprep.subr.mxu0 0.0
    %984 = vmatpush1.msra.mxu0 0.0
    %985 = vmatprep.subr.mxu0 0.0
    %986 = vmatpush1.msra.mxu0 0.0
    %987 = vmatprep.subr.mxu0 0.0
    %988 = vmatpush1.msra.mxu0 0.0
    %989 = vmatprep.mubr.f32.mxu0 0.0
    %990 = vmatmul.mubr.f32.gmra.mrb[0].mxu0 %v401
    %v991 = vpop.f32.mrb[0].mxu0
    %v992 = vadd.f32 0.0, %v991
    %v993 = vpop.f32.mrb[0].mxu0
    %994 = vmatprep.mubr.f32.mxu0 0.0
    %995 = vmatmul.mubr.f32.gmra.mrb[0].mxu0 %v404
    %v996 = vpop.f32.mrb[0].mxu0
    %v997 = vadd.f32 0.0, %v996
    %v998 = vpop.f32.mrb[0].mxu0
    %999 = vdwg.mxu0
    %v1001 = vlaneseq
    %v1002 = vshrl.u32 %v1001, 7
    %v1003 = vsub.s32 0, %v1002
    %v1004 = vrot.slane %v921, %v1003
    %v1007 = vsel %vm399, %v992, 0
    %v1010 = vsel %vm399, %v997, 0
    %1012 = vmatprep.subr.mxu0 0.0
    %1013 = vmatpush1.msra.mxu0 %v919
    %1014 = vmatprep.subr.mxu0 0.0
    %1015 = vmatpush1.msra.mxu0 %v920
    %1016 = vmatprep.subr.mxu0 0.0
    %1017 = vmatpush1.msra.mxu0 0.0
    %1018 = vmatprep.subr.mxu0 0.0
    %1019 = vmatpush1.msra.mxu0 0.0
    %1020 = vmatprep.subr.mxu0 0.0
    %1021 = vmatpush1.msra.mxu0 0.0
    %1022 = vmatprep.subr.mxu0 0.0
    %1023 = vmatpush1.msra.mxu0 0.0
    %1024 = vmatprep.subr.mxu0 0.0
    %1025 = vmatpush1.msra.mxu0 0.0
    %1026 = vmatprep.subr.mxu0 0.0
    %1027 = vmatpush1.msra.mxu0 0.0
    %1028 = vmatprep.subr.mxu0 0.0
    %1029 = vmatpush1.msra.mxu0 0.0
    %1030 = vmatprep.subr.mxu0 0.0
    %1031 = vmatpush1.msra.mxu0 0.0
    %1032 = vmatprep.subr.mxu0 0.0
    %1033 = vmatpush1.msra.mxu0 0.0
    %1034 = vmatprep.subr.mxu0 0.0
    %1035 = vmatpush1.msra.mxu0 0.0
    %1036 = vmatprep.subr.mxu0 0.0
    %1037 = vmatpush1.msra.mxu0 0.0
    %1038 = vmatprep.subr.mxu0 0.0
    %1039 = vmatpush1.msra.mxu0 0.0
    %1040 = vmatprep.subr.mxu0 0.0
    %1041 = vmatpush1.msra.mxu0 0.0
    %1042 = vmatprep.subr.mxu0 0.0
    %1043 = vmatpush1.msra.mxu0 0.0
    %1044 = vmatprep.subr.mxu0 0.0
    %1045 = vmatpush1.msra.mxu0 0.0
    %1046 = vmatprep.subr.mxu0 0.0
    %1047 = vmatpush1.msra.mxu0 0.0
    %1048 = vmatprep.subr.mxu0 0.0
    %1049 = vmatpush1.msra.mxu0 0.0
    %1050 = vmatprep.subr.mxu0 0.0
    %1051 = vmatpush1.msra.mxu0 0.0
    %1052 = vmatprep.subr.mxu0 0.0
    %1053 = vmatpush1.msra.mxu0 0.0
    %1054 = vmatprep.subr.mxu0 0.0
    %1055 = vmatpush1.msra.mxu0 0.0
    %1056 = vmatprep.subr.mxu0 0.0
    %1057 = vmatpush1.msra.mxu0 0.0
    %1058 = vmatprep.subr.mxu0 0.0
    %1059 = vmatpush1.msra.mxu0 0.0
    %1060 = vmatprep.subr.mxu0 0.0
    %1061 = vmatpush1.msra.mxu0 0.0
    %1062 = vmatprep.subr.mxu0 0.0
    %1063 = vmatpush1.msra.mxu0 0.0
    %1064 = vmatprep.subr.mxu0 0.0
    %1065 = vmatpush1.msra.mxu0 0.0
    %1066 = vmatprep.subr.mxu0 0.0
    %1067 = vmatpush1.msra.mxu0 0.0
    %1068 = vmatprep.subr.mxu0 0.0
    %1069 = vmatpush1.msra.mxu0 0.0
    %1070 = vmatprep.subr.mxu0 0.0
    %1071 = vmatpush1.msra.mxu0 0.0
    %1072 = vmatprep.subr.mxu0 0.0
    %1073 = vmatpush1.msra.mxu0 0.0
    %1074 = vmatprep.subr.mxu0 0.0
    %1075 = vmatpush1.msra.mxu0 0.0
    %1076 = vmatprep.mubr.f32.mxu0 0.0
    %1077 = vmatmul.mubr.f32.gmra.mrb[0].mxu0 %v1007
    %v1078 = vpop.f32.mrb[0].mxu0
    %v1079 = vadd.f32 %v1004, %v1078
    %v1080 = vpop.f32.mrb[0].mxu0
    %1081 = vmatprep.mubr.f32.mxu0 0.0
    %1082 = vmatmul.mubr.f32.gmra.mrb[0].mxu0 %v1010
    %v1083 = vpop.f32.mrb[0].mxu0
    %v1084 = vadd.f32 %v1004, %v1083
    %v1085 = vpop.f32.mrb[0].mxu0
    %1086 = vdwg.mxu0
    %v1087 = vmax.f32 %v1079, 0.0
    %v1088 = vmax.f32 %v1084, 0.0
    %v1090 = vlaneseq
    %v1091 = vshrl.u32 %v1090, 7
    %v1092 = vsub.s32 0, %v1091
    %v1093 = vrot.slane %v924, %v1092
    %v1096 = vsel %vm399, %v1087, 0
    %v1099 = vsel %vm399, %v1088, 0
    %1101 = vmatprep.subr.mxu0 0.0
    %1102 = vmatpush1.msra.mxu0 %v922
    %1103 = vmatprep.subr.mxu0 0.0
    %1104 = vmatpush1.msra.mxu0 %v923
    %1105 = vmatprep.subr.mxu0 0.0
    %1106 = vmatpush1.msra.mxu0 0.0
    %1107 = vmatprep.subr.mxu0 0.0
    %1108 = vmatpush1.msra.mxu0 0.0
    %1109 = vmatprep.subr.mxu0 0.0
    %1110 = vmatpush1.msra.mxu0 0.0
    %1111 = vmatprep.subr.mxu0 0.0
    %1112 = vmatpush1.msra.mxu0 0.0
    %1113 = vmatprep.subr.mxu0 0.0
    %1114 = vmatpush1.msra.mxu0 0.0
    %1115 = vmatprep.subr.mxu0 0.0
    %1116 = vmatpush1.msra.mxu0 0.0
    %1117 = vmatprep.subr.mxu0 0.0
    %1118 = vmatpush1.msra.mxu0 0.0
    %1119 = vmatprep.subr.mxu0 0.0
    %1120 = vmatpush1.msra.mxu0 0.0
    %1121 = vmatprep.subr.mxu0 0.0
    %1122 = vmatpush1.msra.mxu0 0.0
    %1123 = vmatprep.subr.mxu0 0.0
    %1124 = vmatpush1.msra.mxu0 0.0
    %1125 = vmatprep.subr.mxu0 0.0
    %1126 = vmatpush1.msra.mxu0 0.0
    %1127 = vmatprep.subr.mxu0 0.0
    %1128 = vmatpush1.msra.mxu0 0.0
    %1129 = vmatprep.subr.mxu0 0.0
    %1130 = vmatpush1.msra.mxu0 0.0
    %1131 = vmatprep.subr.mxu0 0.0
    %1132 = vmatpush1.msra.mxu0 0.0
    %1133 = vmatprep.subr.mxu0 0.0
    %1134 = vmatpush1.msra.mxu0 0.0
    %1135 = vmatprep.subr.mxu0 0.0
    %1136 = vmatpush1.msra.mxu0 0.0
    %1137 = vmatprep.subr.mxu0 0.0
    %1138 = vmatpush1.msra.mxu0 0.0
    %1139 = vmatprep.subr.mxu0 0.0
    %1140 = vmatpush1.msra.mxu0 0.0
    %1141 = vmatprep.subr.mxu0 0.0
    %1142 = vmatpush1.msra.mxu0 0.0
    %1143 = vmatprep.subr.mxu0 0.0
    %1144 = vmatpush1.msra.mxu0 0.0
    %1145 = vmatprep.subr.mxu0 0.0
    %1146 = vmatpush1.msra.mxu0 0.0
    %1147 = vmatprep.subr.mxu0 0.0
    %1148 = vmatpush1.msra.mxu0 0.0
    %1149 = vmatprep.subr.mxu0 0.0
    %1150 = vmatpush1.msra.mxu0 0.0
    %1151 = vmatprep.subr.mxu0 0.0
    %1152 = vmatpush1.msra.mxu0 0.0
    %1153 = vmatprep.subr.mxu0 0.0
    %1154 = vmatpush1.msra.mxu0 0.0
    %1155 = vmatprep.subr.mxu0 0.0
    %1156 = vmatpush1.msra.mxu0 0.0
    %1157 = vmatprep.subr.mxu0 0.0
    %1158 = vmatpush1.msra.mxu0 0.0
    %1159 = vmatprep.subr.mxu0 0.0
    %1160 = vmatpush1.msra.mxu0 0.0
    %1161 = vmatprep.subr.mxu0 0.0
    %1162 = vmatpush1.msra.mxu0 0.0
    %1163 = vmatprep.subr.mxu0 0.0
    %1164 = vmatpush1.msra.mxu0 0.0
    %1165 = vmatprep.mubr.f32.mxu0 0.0
    %1166 = vmatmul.mubr.f32.gmra.mrb[0].mxu0 %v1096
    %v1167 = vpop.f32.mrb[0].mxu0
    %v1168 = vadd.f32 %v1093, %v1167
    %v1169 = vpop.f32.mrb[0].mxu0
    %1170 = vmatprep.mubr.f32.mxu0 0.0
    %1171 = vmatmul.mubr.f32.gmra.mrb[0].mxu0 %v1099
    %v1172 = vpop.f32.mrb[0].mxu0
    %v1173 = vadd.f32 %v1093, %v1172
    %v1174 = vpop.f32.mrb[0].mxu0
    %1175 = vdwg.mxu0
    %v1176 = vmax.f32 %v1168, 0.0
    %v1177 = vmax.f32 %v1173, 0.0
    %v1178 = vld [vmem:[#allocation23] sm:$0xff]
    %v1179 = vld [vmem:[#allocation23 + $0x8] sm:$0xff]
    %v1180 = vld [vmem:[#allocation25] sm:$0x1]
    %v1181 = vld [vmem:[#allocation26] sm:$0xff]
    %v1182 = vld [vmem:[#allocation26 + $0x8] sm:$0xff]
    %v1183 = vld [vmem:[%s37] sm:$0x1]
    %1184 = vmatprep.subr.mxu0 0.0
    %1185 = vmatpush1.msra.mxu0 %v1176
    %1186 = vmatprep.subr.mxu0 0.0
    %1187 = vmatpush1.msra.mxu0 %v1177
    %1188 = vmatprep.subr.mxu0 0.0
    %1189 = vmatpush1.msra.mxu0 0.0
    %1190 = vmatprep.subr.mxu0 0.0
    %1191 = vmatpush1.msra.mxu0 0.0
    %1192 = vmatprep.subr.mxu0 0.0
    %1193 = vmatpush1.msra.mxu0 0.0
    %1194 = vmatprep.subr.mxu0 0.0
    %1195 = vmatpush1.msra.mxu0 0.0
    %1196 = vmatprep.subr.mxu0 0.0
    %1197 = vmatpush1.msra.mxu0 0.0
    %1198 = vmatprep.subr.mxu0 0.0
    %1199 = vmatpush1.msra.mxu0 0.0
    %1200 = vmatprep.subr.mxu0 0.0
    %1201 = vmatpush1.msra.mxu0 0.0
    %1202 = vmatprep.subr.mxu0 0.0
    %1203 = vmatpush1.msra.mxu0 0.0
    %1204 = vmatprep.subr.mxu0 0.0
    %1205 = vmatpush1.msra.mxu0 0.0
    %1206 = vmatprep.subr.mxu0 0.0
    %1207 = vmatpush1.msra.mxu0 0.0
    %1208 = vmatprep.subr.mxu0 0.0
    %1209 = vmatpush1.msra.mxu0 0.0
    %1210 = vmatprep.subr.mxu0 0.0
    %1211 = vmatpush1.msra.mxu0 0.0
    %1212 = vmatprep.subr.mxu0 0.0
    %1213 = vmatpush1.msra.mxu0 0.0
    %1214 = vmatprep.subr.mxu0 0.0
    %1215 = vmatpush1.msra.mxu0 0.0
    %1216 = vmatprep.subr.mxu0 0.0
    %1217 = vmatpush1.msra.mxu0 0.0
    %1218 = vmatprep.subr.mxu0 0.0
    %1219 = vmatpush1.msra.mxu0 0.0
    %1220 = vmatprep.subr.mxu0 0.0
    %1221 = vmatpush1.msra.mxu0 0.0
    %1222 = vmatprep.subr.mxu0 0.0
    %1223 = vmatpush1.msra.mxu0 0.0
    %1224 = vmatprep.subr.mxu0 0.0
    %1225 = vmatpush1.msra.mxu0 0.0
    %1226 = vmatprep.subr.mxu0 0.0
    %1227 = vmatpush1.msra.mxu0 0.0
    %1228 = vmatprep.subr.mxu0 0.0
    %1229 = vmatpush1.msra.mxu0 0.0
    %1230 = vmatprep.subr.mxu0 0.0
    %1231 = vmatpush1.msra.mxu0 0.0
    %1232 = vmatprep.subr.mxu0 0.0
    %1233 = vmatpush1.msra.mxu0 0.0
    %1234 = vmatprep.subr.mxu0 0.0
    %1235 = vmatpush1.msra.mxu0 0.0
    %1236 = vmatprep.subr.mxu0 0.0
    %1237 = vmatpush1.msra.mxu0 0.0
    %1238 = vmatprep.subr.mxu0 0.0
    %1239 = vmatpush1.msra.mxu0 0.0
    %1240 = vmatprep.subr.mxu0 0.0
    %1241 = vmatpush1.msra.mxu0 0.0
    %1242 = vmatprep.subr.mxu0 0.0
    %1243 = vmatpush1.msra.mxu0 0.0
    %1244 = vmatprep.subr.mxu0 0.0
    %1245 = vmatpush1.msra.mxu0 0.0
    %1246 = vmatprep.subr.mxu0 0.0
    %1247 = vmatpush1.msra.mxu0 0.0
    %1248 = vmatprep.mubr.f32.mxu0 0.0
    %1249 = vmatmul.mubr.f32.gmra.mrb[0].mxu0 %v401
    %v1250 = vpop.f32.mrb[0].mxu0
    %v1251 = vadd.f32 0.0, %v1250
    %v1252 = vpop.f32.mrb[0].mxu0
    %1253 = vmatprep.mubr.f32.mxu0 0.0
    %1254 = vmatmul.mubr.f32.gmra.mrb[0].mxu0 %v404
    %v1255 = vpop.f32.mrb[0].mxu0
    %v1256 = vadd.f32 0.0, %v1255
    %v1257 = vpop.f32.mrb[0].mxu0
    %1258 = vdwg.mxu0
    %v1260 = vlaneseq
    %v1261 = vshrl.u32 %v1260, 7
    %v1262 = vsub.s32 0, %v1261
    %v1263 = vrot.slane %v1180, %v1262
    %v1266 = vsel %vm399, %v1251, 0
    %v1269 = vsel %vm399, %v1256, 0
    %1271 = vmatprep.subr.mxu0 0.0
    %1272 = vmatpush1.msra.mxu0 %v1178
    %1273 = vmatprep.subr.mxu0 0.0
    %1274 = vmatpush1.msra.mxu0 %v1179
    %1275 = vmatprep.subr.mxu0 0.0
    %1276 = vmatpush1.msra.mxu0 0.0
    %1277 = vmatprep.subr.mxu0 0.0
    %1278 = vmatpush1.msra.mxu0 0.0
    %1279 = vmatprep.subr.mxu0 0.0
    %1280 = vmatpush1.msra.mxu0 0.0
    %1281 = vmatprep.subr.mxu0 0.0
    %1282 = vmatpush1.msra.mxu0 0.0
    %1283 = vmatprep.subr.mxu0 0.0
    %1284 = vmatpush1.msra.mxu0 0.0
    %1285 = vmatprep.subr.mxu0 0.0
    %1286 = vmatpush1.msra.mxu0 0.0
    %1287 = vmatprep.subr.mxu0 0.0
    %1288 = vmatpush1.msra.mxu0 0.0
    %1289 = vmatprep.subr.mxu0 0.0
    %1290 = vmatpush1.msra.mxu0 0.0
    %1291 = vmatprep.subr.mxu0 0.0
    %1292 = vmatpush1.msra.mxu0 0.0
    %1293 = vmatprep.subr.mxu0 0.0
    %1294 = vmatpush1.msra.mxu0 0.0
    %1295 = vmatprep.subr.mxu0 0.0
    %1296 = vmatpush1.msra.mxu0 0.0
    %1297 = vmatprep.subr.mxu0 0.0
    %1298 = vmatpush1.msra.mxu0 0.0
    %1299 = vmatprep.subr.mxu0 0.0
    %1300 = vmatpush1.msra.mxu0 0.0
    %1301 = vmatprep.subr.mxu0 0.0
    %1302 = vmatpush1.msra.mxu0 0.0
    %1303 = vmatprep.subr.mxu0 0.0
    %1304 = vmatpush1.msra.mxu0 0.0
    %1305 = vmatprep.subr.mxu0 0.0
    %1306 = vmatpush1.msra.mxu0 0.0
    %1307 = vmatprep.subr.mxu0 0.0
    %1308 = vmatpush1.msra.mxu0 0.0
    %1309 = vmatprep.subr.mxu0 0.0
    %1310 = vmatpush1.msra.mxu0 0.0
    %1311 = vmatprep.subr.mxu0 0.0
    %1312 = vmatpush1.msra.mxu0 0.0
    %1313 = vmatprep.subr.mxu0 0.0
    %1314 = vmatpush1.msra.mxu0 0.0
    %1315 = vmatprep.subr.mxu0 0.0
    %1316 = vmatpush1.msra.mxu0 0.0
    %1317 = vmatprep.subr.mxu0 0.0
    %1318 = vmatpush1.msra.mxu0 0.0
    %1319 = vmatprep.subr.mxu0 0.0
    %1320 = vmatpush1.msra.mxu0 0.0
    %1321 = vmatprep.subr.mxu0 0.0
    %1322 = vmatpush1.msra.mxu0 0.0
    %1323 = vmatprep.subr.mxu0 0.0
    %1324 = vmatpush1.msra.mxu0 0.0
    %1325 = vmatprep.subr.mxu0 0.0
    %1326 = vmatpush1.msra.mxu0 0.0
    %1327 = vmatprep.subr.mxu0 0.0
    %1328 = vmatpush1.msra.mxu0 0.0
    %1329 = vmatprep.subr.mxu0 0.0
    %1330 = vmatpush1.msra.mxu0 0.0
    %1331 = vmatprep.subr.mxu0 0.0
    %1332 = vmatpush1.msra.mxu0 0.0
    %1333 = vmatprep.subr.mxu0 0.0
    %1334 = vmatpush1.msra.mxu0 0.0
    %1335 = vmatprep.mubr.f32.mxu0 0.0
    %1336 = vmatmul.mubr.f32.gmra.mrb[0].mxu0 %v1266
    %v1337 = vpop.f32.mrb[0].mxu0
    %v1338 = vadd.f32 %v1263, %v1337
    %v1339 = vpop.f32.mrb[0].mxu0
    %1340 = vmatprep.mubr.f32.mxu0 0.0
    %1341 = vmatmul.mubr.f32.gmra.mrb[0].mxu0 %v1269
    %v1342 = vpop.f32.mrb[0].mxu0
    %v1343 = vadd.f32 %v1263, %v1342
    %v1344 = vpop.f32.mrb[0].mxu0
    %1345 = vdwg.mxu0
    %v1346 = vmax.f32 %v1338, 0.0
    %v1347 = vmax.f32 %v1343, 0.0
    %v1349 = vlaneseq
    %v1350 = vshrl.u32 %v1349, 7
    %v1351 = vsub.s32 0, %v1350
    %v1352 = vrot.slane %v1183, %v1351
    %v1355 = vsel %vm399, %v1346, 0
    %v1358 = vsel %vm399, %v1347, 0
    %1360 = vmatprep.subr.mxu0 0.0
    %1361 = vmatpush1.msra.mxu0 %v1181
    %1362 = vmatprep.subr.mxu0 0.0
    %1363 = vmatpush1.msra.mxu0 %v1182
    %1364 = vmatprep.subr.mxu0 0.0
    %1365 = vmatpush1.msra.mxu0 0.0
    %1366 = vmatprep.subr.mxu0 0.0
    %1367 = vmatpush1.msra.mxu0 0.0
    %1368 = vmatprep.subr.mxu0 0.0
    %1369 = vmatpush1.msra.mxu0 0.0
    %1370 = vmatprep.subr.mxu0 0.0
    %1371 = vmatpush1.msra.mxu0 0.0
    %1372 = vmatprep.subr.mxu0 0.0
    %1373 = vmatpush1.msra.mxu0 0.0
    %1374 = vmatprep.subr.mxu0 0.0
    %1375 = vmatpush1.msra.mxu0 0.0
    %1376 = vmatprep.subr.mxu0 0.0
    %1377 = vmatpush1.msra.mxu0 0.0
    %1378 = vmatprep.subr.mxu0 0.0
    %1379 = vmatpush1.msra.mxu0 0.0
    %1380 = vmatprep.subr.mxu0 0.0
    %1381 = vmatpush1.msra.mxu0 0.0
    %1382 = vmatprep.subr.mxu0 0.0
    %1383 = vmatpush1.msra.mxu0 0.0
    %1384 = vmatprep.subr.mxu0 0.0
    %1385 = vmatpush1.msra.mxu0 0.0
    %1386 = vmatprep.subr.mxu0 0.0
    %1387 = vmatpush1.msra.mxu0 0.0
    %1388 = vmatprep.subr.mxu0 0.0
    %1389 = vmatpush1.msra.mxu0 0.0
    %1390 = vmatprep.subr.mxu0 0.0
    %1391 = vmatpush1.msra.mxu0 0.0
    %1392 = vmatprep.subr.mxu0 0.0
    %1393 = vmatpush1.msra.mxu0 0.0
    %1394 = vmatprep.subr.mxu0 0.0
    %1395 = vmatpush1.msra.mxu0 0.0
    %1396 = vmatprep.subr.mxu0 0.0
    %1397 = vmatpush1.msra.mxu0 0.0
    %1398 = vmatprep.subr.mxu0 0.0
    %1399 = vmatpush1.msra.mxu0 0.0
    %1400 = vmatprep.subr.mxu0 0.0
    %1401 = vmatpush1.msra.mxu0 0.0
    %1402 = vmatprep.subr.mxu0 0.0
    %1403 = vmatpush1.msra.mxu0 0.0
    %1404 = vmatprep.subr.mxu0 0.0
    %1405 = vmatpush1.msra.mxu0 0.0
    %1406 = vmatprep.subr.mxu0 0.0
    %1407 = vmatpush1.msra.mxu0 0.0
    %1408 = vmatprep.subr.mxu0 0.0
    %1409 = vmatpush1.msra.mxu0 0.0
    %1410 = vmatprep.subr.mxu0 0.0
    %1411 = vmatpush1.msra.mxu0 0.0
    %1412 = vmatprep.subr.mxu0 0.0
    %1413 = vmatpush1.msra.mxu0 0.0
    %1414 = vmatprep.subr.mxu0 0.0
    %1415 = vmatpush1.msra.mxu0 0.0
    %1416 = vmatprep.subr.mxu0 0.0
    %1417 = vmatpush1.msra.mxu0 0.0
    %1418 = vmatprep.subr.mxu0 0.0
    %1419 = vmatpush1.msra.mxu0 0.0
    %1420 = vmatprep.subr.mxu0 0.0
    %1421 = vmatpush1.msra.mxu0 0.0
    %1422 = vmatprep.subr.mxu0 0.0
    %1423 = vmatpush1.msra.mxu0 0.0
    %1424 = vmatprep.mubr.f32.mxu0 0.0
    %1425 = vmatmul.mubr.f32.gmra.mrb[0].mxu0 %v1355
    %v1426 = vpop.f32.mrb[0].mxu0
    %v1427 = vadd.f32 %v1352, %v1426
    %v1428 = vpop.f32.mrb[0].mxu0
    %1429 = vmatprep.mubr.f32.mxu0 0.0
    %1430 = vmatmul.mubr.f32.gmra.mrb[0].mxu0 %v1358
    %v1431 = vpop.f32.mrb[0].mxu0
    %v1432 = vadd.f32 %v1352, %v1431
    %v1433 = vpop.f32.mrb[0].mxu0
    %1434 = vdwg.mxu0
    %v1435 = vmax.f32 %v1427, 0.0
    %v1436 = vmax.f32 %v1432, 0.0
    %v1437 = vld [vmem:[#allocation28] sm:$0xff]
    %v1438 = vld [vmem:[#allocation28 + $0x8] sm:$0xff]
    %v1439 = vld [vmem:[%s41] sm:$0x1]
    %v1440 = vld [vmem:[#allocation29] sm:$0xff]
    %v1441 = vld [vmem:[#allocation29 + $0x8] sm:$0xff]
    %v1442 = vld [vmem:[#allocation31] sm:$0x1]
    %1443 = vmatprep.subr.mxu0 0.0
    %1444 = vmatpush1.msra.mxu0 %v1435
    %1445 = vmatprep.subr.mxu0 0.0
    %1446 = vmatpush1.msra.mxu0 %v1436
    %1447 = vmatprep.subr.mxu0 0.0
    %1448 = vmatpush1.msra.mxu0 0.0
    %1449 = vmatprep.subr.mxu0 0.0
    %1450 = vmatpush1.msra.mxu0 0.0
    %1451 = vmatprep.subr.mxu0 0.0
    %1452 = vmatpush1.msra.mxu0 0.0
    %1453 = vmatprep.subr.mxu0 0.0
    %1454 = vmatpush1.msra.mxu0 0.0
    %1455 = vmatprep.subr.mxu0 0.0
    %1456 = vmatpush1.msra.mxu0 0.0
    %1457 = vmatprep.subr.mxu0 0.0
    %1458 = vmatpush1.msra.mxu0 0.0
    %1459 = vmatprep.subr.mxu0 0.0
    %1460 = vmatpush1.msra.mxu0 0.0
    %1461 = vmatprep.subr.mxu0 0.0
    %1462 = vmatpush1.msra.mxu0 0.0
    %1463 = vmatprep.subr.mxu0 0.0
    %1464 = vmatpush1.msra.mxu0 0.0
    %1465 = vmatprep.subr.mxu0 0.0
    %1466 = vmatpush1.msra.mxu0 0.0
    %1467 = vmatprep.subr.mxu0 0.0
    %1468 = vmatpush1.msra.mxu0 0.0
    %1469 = vmatprep.subr.mxu0 0.0
    %1470 = vmatpush1.msra.mxu0 0.0
    %1471 = vmatprep.subr.mxu0 0.0
    %1472 = vmatpush1.msra.mxu0 0.0
    %1473 = vmatprep.subr.mxu0 0.0
    %1474 = vmatpush1.msra.mxu0 0.0
    %1475 = vmatprep.subr.mxu0 0.0
    %1476 = vmatpush1.msra.mxu0 0.0
    %1477 = vmatprep.subr.mxu0 0.0
    %1478 = vmatpush1.msra.mxu0 0.0
    %1479 = vmatprep.subr.mxu0 0.0
    %1480 = vmatpush1.msra.mxu0 0.0
    %1481 = vmatprep.subr.mxu0 0.0
    %1482 = vmatpush1.msra.mxu0 0.0
    %1483 = vmatprep.subr.mxu0 0.0
    %1484 = vmatpush1.msra.mxu0 0.0
    %1485 = vmatprep.subr.mxu0 0.0
    %1486 = vmatpush1.msra.mxu0 0.0
    %1487 = vmatprep.subr.mxu0 0.0
    %1488 = vmatpush1.msra.mxu0 0.0
    %1489 = vmatprep.subr.mxu0 0.0
    %1490 = vmatpush1.msra.mxu0 0.0
    %1491 = vmatprep.subr.mxu0 0.0
    %1492 = vmatpush1.msra.mxu0 0.0
    %1493 = vmatprep.subr.mxu0 0.0
    %1494 = vmatpush1.msra.mxu0 0.0
    %1495 = vmatprep.subr.mxu0 0.0
    %1496 = vmatpush1.msra.mxu0 0.0
    %1497 = vmatprep.subr.mxu0 0.0
    %1498 = vmatpush1.msra.mxu0 0.0
    %1499 = vmatprep.subr.mxu0 0.0
    %1500 = vmatpush1.msra.mxu0 0.0
    %1501 = vmatprep.subr.mxu0 0.0
    %1502 = vmatpush1.msra.mxu0 0.0
    %1503 = vmatprep.subr.mxu0 0.0
    %1504 = vmatpush1.msra.mxu0 0.0
    %1505 = vmatprep.subr.mxu0 0.0
    %1506 = vmatpush1.msra.mxu0 0.0
    %1507 = vmatprep.mubr.f32.mxu0 0.0
    %1508 = vmatmul.mubr.f32.gmra.mrb[0].mxu0 %v401
    %v1509 = vpop.f32.mrb[0].mxu0
    %v1510 = vadd.f32 0.0, %v1509
    %v1511 = vpop.f32.mrb[0].mxu0
    %1512 = vmatprep.mubr.f32.mxu0 0.0
    %1513 = vmatmul.mubr.f32.gmra.mrb[0].mxu0 %v404
    %v1514 = vpop.f32.mrb[0].mxu0
    %v1515 = vadd.f32 0.0, %v1514
    %v1516 = vpop.f32.mrb[0].mxu0
    %1517 = vdwg.mxu0
    %v1519 = vlaneseq
    %v1520 = vshrl.u32 %v1519, 7
    %v1521 = vsub.s32 0, %v1520
    %v1522 = vrot.slane %v1439, %v1521
    %v1525 = vsel %vm399, %v1510, 0
    %v1528 = vsel %vm399, %v1515, 0
    %1530 = vmatprep.subr.mxu0 0.0
    %1531 = vmatpush1.msra.mxu0 %v1437
    %1532 = vmatprep.subr.mxu0 0.0
    %1533 = vmatpush1.msra.mxu0 %v1438
    %1534 = vmatprep.subr.mxu0 0.0
    %1535 = vmatpush1.msra.mxu0 0.0
    %1536 = vmatprep.subr.mxu0 0.0
    %1537 = vmatpush1.msra.mxu0 0.0
    %1538 = vmatprep.subr.mxu0 0.0
    %1539 = vmatpush1.msra.mxu0 0.0
    %1540 = vmatprep.subr.mxu0 0.0
    %1541 = vmatpush1.msra.mxu0 0.0
    %1542 = vmatprep.subr.mxu0 0.0
    %1543 = vmatpush1.msra.mxu0 0.0
    %1544 = vmatprep.subr.mxu0 0.0
    %1545 = vmatpush1.msra.mxu0 0.0
    %1546 = vmatprep.subr.mxu0 0.0
    %1547 = vmatpush1.msra.mxu0 0.0
    %1548 = vmatprep.subr.mxu0 0.0
    %1549 = vmatpush1.msra.mxu0 0.0
    %1550 = vmatprep.subr.mxu0 0.0
    %1551 = vmatpush1.msra.mxu0 0.0
    %1552 = vmatprep.subr.mxu0 0.0
    %1553 = vmatpush1.msra.mxu0 0.0
    %1554 = vmatprep.subr.mxu0 0.0
    %1555 = vmatpush1.msra.mxu0 0.0
    %1556 = vmatprep.subr.mxu0 0.0
    %1557 = vmatpush1.msra.mxu0 0.0
    %1558 = vmatprep.subr.mxu0 0.0
    %1559 = vmatpush1.msra.mxu0 0.0
    %1560 = vmatprep.subr.mxu0 0.0
    %1561 = vmatpush1.msra.mxu0 0.0
    %1562 = vmatprep.subr.mxu0 0.0
    %1563 = vmatpush1.msra.mxu0 0.0
    %1564 = vmatprep.subr.mxu0 0.0
    %1565 = vmatpush1.msra.mxu0 0.0
    %1566 = vmatprep.subr.mxu0 0.0
    %1567 = vmatpush1.msra.mxu0 0.0
    %1568 = vmatprep.subr.mxu0 0.0
    %1569 = vmatpush1.msra.mxu0 0.0
    %1570 = vmatprep.subr.mxu0 0.0
    %1571 = vmatpush1.msra.mxu0 0.0
    %1572 = vmatprep.subr.mxu0 0.0
    %1573 = vmatpush1.msra.mxu0 0.0
    %1574 = vmatprep.subr.mxu0 0.0
    %1575 = vmatpush1.msra.mxu0 0.0
    %1576 = vmatprep.subr.mxu0 0.0
    %1577 = vmatpush1.msra.mxu0 0.0
    %1578 = vmatprep.subr.mxu0 0.0
    %1579 = vmatpush1.msra.mxu0 0.0
    %1580 = vmatprep.subr.mxu0 0.0
    %1581 = vmatpush1.msra.mxu0 0.0
    %1582 = vmatprep.subr.mxu0 0.0
    %1583 = vmatpush1.msra.mxu0 0.0
    %1584 = vmatprep.subr.mxu0 0.0
    %1585 = vmatpush1.msra.mxu0 0.0
    %1586 = vmatprep.subr.mxu0 0.0
    %1587 = vmatpush1.msra.mxu0 0.0
    %1588 = vmatprep.subr.mxu0 0.0
    %1589 = vmatpush1.msra.mxu0 0.0
    %1590 = vmatprep.subr.mxu0 0.0
    %1591 = vmatpush1.msra.mxu0 0.0
    %1592 = vmatprep.subr.mxu0 0.0
    %1593 = vmatpush1.msra.mxu0 0.0
    %1594 = vmatprep.mubr.f32.mxu0 0.0
    %1595 = vmatmul.mubr.f32.gmra.mrb[0].mxu0 %v1525
    %v1596 = vpop.f32.mrb[0].mxu0
    %v1597 = vadd.f32 %v1522, %v1596
    %v1598 = vpop.f32.mrb[0].mxu0
    %1599 = vmatprep.mubr.f32.mxu0 0.0
    %1600 = vmatmul.mubr.f32.gmra.mrb[0].mxu0 %v1528
    %v1601 = vpop.f32.mrb[0].mxu0
    %v1602 = vadd.f32 %v1522, %v1601
    %v1603 = vpop.f32.mrb[0].mxu0
    %1604 = vdwg.mxu0
    %v1605 = vmax.f32 %v1597, 0.0
    %v1606 = vmax.f32 %v1602, 0.0
    %v1608 = vlaneseq
    %v1609 = vshrl.u32 %v1608, 7
    %v1610 = vsub.s32 0, %v1609
    %v1611 = vrot.slane %v1442, %v1610
    %v1614 = vsel %vm399, %v1605, 0
    %v1617 = vsel %vm399, %v1606, 0
    %1619 = vmatprep.subr.mxu0 0.0
    %1620 = vmatpush1.msra.mxu0 %v1440
    %1621 = vmatprep.subr.mxu0 0.0
    %1622 = vmatpush1.msra.mxu0 %v1441
    %1623 = vmatprep.subr.mxu0 0.0
    %1624 = vmatpush1.msra.mxu0 0.0
    %1625 = vmatprep.subr.mxu0 0.0
    %1626 = vmatpush1.msra.mxu0 0.0
    %1627 = vmatprep.subr.mxu0 0.0
    %1628 = vmatpush1.msra.mxu0 0.0
    %1629 = vmatprep.subr.mxu0 0.0
    %1630 = vmatpush1.msra.mxu0 0.0
    %1631 = vmatprep.subr.mxu0 0.0
    %1632 = vmatpush1.msra.mxu0 0.0
    %1633 = vmatprep.subr.mxu0 0.0
    %1634 = vmatpush1.msra.mxu0 0.0
    %1635 = vmatprep.subr.mxu0 0.0
    %1636 = vmatpush1.msra.mxu0 0.0
    %1637 = vmatprep.subr.mxu0 0.0
    %1638 = vmatpush1.msra.mxu0 0.0
    %1639 = vmatprep.subr.mxu0 0.0
    %1640 = vmatpush1.msra.mxu0 0.0
    %1641 = vmatprep.subr.mxu0 0.0
    %1642 = vmatpush1.msra.mxu0 0.0
    %1643 = vmatprep.subr.mxu0 0.0
    %1644 = vmatpush1.msra.mxu0 0.0
    %1645 = vmatprep.subr.mxu0 0.0
    %1646 = vmatpush1.msra.mxu0 0.0
    %1647 = vmatprep.subr.mxu0 0.0
    %1648 = vmatpush1.msra.mxu0 0.0
    %1649 = vmatprep.subr.mxu0 0.0
    %1650 = vmatpush1.msra.mxu0 0.0
    %1651 = vmatprep.subr.mxu0 0.0
    %1652 = vmatpush1.msra.mxu0 0.0
    %1653 = vmatprep.subr.mxu0 0.0
    %1654 = vmatpush1.msra.mxu0 0.0
    %1655 = vmatprep.subr.mxu0 0.0
    %1656 = vmatpush1.msra.mxu0 0.0
    %1657 = vmatprep.subr.mxu0 0.0
    %1658 = vmatpush1.msra.mxu0 0.0
    %1659 = vmatprep.subr.mxu0 0.0
    %1660 = vmatpush1.msra.mxu0 0.0
    %1661 = vmatprep.subr.mxu0 0.0
    %1662 = vmatpush1.msra.mxu0 0.0
    %1663 = vmatprep.subr.mxu0 0.0
    %1664 = vmatpush1.msra.mxu0 0.0
    %1665 = vmatprep.subr.mxu0 0.0
    %1666 = vmatpush1.msra.mxu0 0.0
    %1667 = vmatprep.subr.mxu0 0.0
    %1668 = vmatpush1.msra.mxu0 0.0
    %1669 = vmatprep.subr.mxu0 0.0
    %1670 = vmatpush1.msra.mxu0 0.0
    %1671 = vmatprep.subr.mxu0 0.0
    %1672 = vmatpush1.msra.mxu0 0.0
    %1673 = vmatprep.subr.mxu0 0.0
    %1674 = vmatpush1.msra.mxu0 0.0
    %1675 = vmatprep.subr.mxu0 0.0
    %1676 = vmatpush1.msra.mxu0 0.0
    %1677 = vmatprep.subr.mxu0 0.0
    %1678 = vmatpush1.msra.mxu0 0.0
    %1679 = vmatprep.subr.mxu0 0.0
    %1680 = vmatpush1.msra.mxu0 0.0
    %1681 = vmatprep.subr.mxu0 0.0
    %1682 = vmatpush1.msra.mxu0 0.0
    %1683 = vmatprep.mubr.f32.mxu0 0.0
    %1684 = vmatmul.mubr.f32.gmra.mrb[0].mxu0 %v1614
    %v1685 = vpop.f32.mrb[0].mxu0
    %v1686 = vadd.f32 %v1611, %v1685
    %v1687 = vpop.f32.mrb[0].mxu0
    %1688 = vmatprep.mubr.f32.mxu0 0.0
    %1689 = vmatmul.mubr.f32.gmra.mrb[0].mxu0 %v1617
    %v1690 = vpop.f32.mrb[0].mxu0
    %v1691 = vadd.f32 %v1611, %v1690
    %v1692 = vpop.f32.mrb[0].mxu0
    %1693 = vdwg.mxu0
    %v1694 = vmax.f32 %v1686, 0.0
    %v1695 = vmax.f32 %v1691, 0.0
    %v1696 = vld [vmem:[%s47] sm:$0xff]
    %v1697 = vld [vmem:[%s47 + $0x8] sm:$0xff]
    %v1698 = vld [vmem:[%s47 + $0x10] sm:$0xff]
    %v1699 = vld [vmem:[%s49] sm:$0xff]
    %v1700 = vld [vmem:[%s49 + $0x8] sm:$0xff]
    %v1701 = vld [vmem:[%s49 + $0x10] sm:$0xff]
    %v1702 = vld [vmem:[%s51] sm:$0xff]
    %v1703 = vld [vmem:[%s51 + $0x8] sm:$0xff]
    %v1704 = vld [vmem:[%s51 + $0x10] sm:$0xff]
    %v1705 = vld [vmem:[#allocation32] sm:$0xff]
    %v1706 = vld [vmem:[#allocation32 + $0x8] sm:$0xff]
    %v1707 = vld [vmem:[#allocation32 + $0x10] sm:$0xff]
    %v1708 = vld [vmem:[%s55] sm:$0x1]
    %v1709 = vld [vmem:[%s57] sm:$0xff]
    %v1710 = vld [vmem:[%s57 + $0x8] sm:$0xff]
    %v1711 = vld [vmem:[%s57 + $0x10] sm:$0xff]
    %v1712 = vld [vmem:[%s57 + $0x18] sm:$0xff]
    %v1713 = vld [vmem:[%s57 + $0x20] sm:$0xff]
    %v1714 = vld [vmem:[%s57 + $0x28] sm:$0xff]
    %v1715 = vld [vmem:[%s57 + $0x30] sm:$0xff]
    %v1716 = vld [vmem:[%s57 + $0x38] sm:$0xff]
    %v1717 = vld [vmem:[%s57 + $0x40] sm:$0xff]
    %v1718 = vld [vmem:[%s57 + $0x48] sm:$0xff]
    %v1719 = vld [vmem:[%s57 + $0x50] sm:$0xff]
    %v1720 = vld [vmem:[%s57 + $0x58] sm:$0xff]
    %v1721 = vld [vmem:[%s59] sm:$0x1]
    %v1722 = vld [vmem:[%s61] sm:$0xff]
    %v1723 = vld [vmem:[%s61 + $0x8] sm:$0xff]
    %v1724 = vld [vmem:[%s61 + $0x10] sm:$0xff]
    %v1725 = vld [vmem:[%s61 + $0x18] sm:$0xff]
    %v1726 = vld [vmem:[%s61 + $0x20] sm:$0xff]
    %v1727 = vld [vmem:[%s61 + $0x28] sm:$0xff]
    %v1728 = vld [vmem:[%s61 + $0x30] sm:$0xff]
    %v1729 = vld [vmem:[%s61 + $0x38] sm:$0xff]
    %v1730 = vld [vmem:[%s61 + $0x40] sm:$0xff]
    %v1731 = vld [vmem:[%s61 + $0x48] sm:$0xff]
    %v1732 = vld [vmem:[%s61 + $0x50] sm:$0xff]
    %v1733 = vld [vmem:[%s61 + $0x58] sm:$0xff]
    %v1734 = vld [vmem:[%s63] sm:$0x1]
    %v1736 = vsel %vm399, %v1696, 0
    %v1739 = vsel %vm399, %v1697, 0
    %v1742 = vsel %vm399, %v1698, 0
    %1744 = vmatprep.subr.mxu0 0.0
    %1745 = vmatpush1.msra.mxu0 %v1694
    %1746 = vmatprep.subr.mxu0 0.0
    %1747 = vmatpush1.msra.mxu0 %v1695
    %1748 = vmatprep.subr.mxu0 0.0
    %1749 = vmatpush1.msra.mxu0 0.0
    %1750 = vmatprep.subr.mxu0 0.0
    %1751 = vmatpush1.msra.mxu0 0.0
    %1752 = vmatprep.subr.mxu0 0.0
    %1753 = vmatpush1.msra.mxu0 0.0
    %1754 = vmatprep.subr.mxu0 0.0
    %1755 = vmatpush1.msra.mxu0 0.0
    %1756 = vmatprep.subr.mxu0 0.0
    %1757 = vmatpush1.msra.mxu0 0.0
    %1758 = vmatprep.subr.mxu0 0.0
    %1759 = vmatpush1.msra.mxu0 0.0
    %1760 = vmatprep.subr.mxu0 0.0
    %1761 = vmatpush1.msra.mxu0 0.0
    %1762 = vmatprep.subr.mxu0 0.0
    %1763 = vmatpush1.msra.mxu0 0.0
    %1764 = vmatprep.subr.mxu0 0.0
    %1765 = vmatpush1.msra.mxu0 0.0
    %1766 = vmatprep.subr.mxu0 0.0
    %1767 = vmatpush1.msra.mxu0 0.0
    %1768 = vmatprep.subr.mxu0 0.0
    %1769 = vmatpush1.msra.mxu0 0.0
    %1770 = vmatprep.subr.mxu0 0.0
    %1771 = vmatpush1.msra.mxu0 0.0
    %1772 = vmatprep.subr.mxu0 0.0
    %1773 = vmatpush1.msra.mxu0 0.0
    %1774 = vmatprep.subr.mxu0 0.0
    %1775 = vmatpush1.msra.mxu0 0.0
    %1776 = vmatprep.subr.mxu0 0.0
    %1777 = vmatpush1.msra.mxu0 0.0
    %1778 = vmatprep.subr.mxu0 0.0
    %1779 = vmatpush1.msra.mxu0 0.0
    %1780 = vmatprep.subr.mxu0 0.0
    %1781 = vmatpush1.msra.mxu0 0.0
    %1782 = vmatprep.subr.mxu0 0.0
    %1783 = vmatpush1.msra.mxu0 0.0
    %1784 = vmatprep.subr.mxu0 0.0
    %1785 = vmatpush1.msra.mxu0 0.0
    %1786 = vmatprep.subr.mxu0 0.0
    %1787 = vmatpush1.msra.mxu0 0.0
    %1788 = vmatprep.subr.mxu0 0.0
    %1789 = vmatpush1.msra.mxu0 0.0
    %1790 = vmatprep.subr.mxu0 0.0
    %1791 = vmatpush1.msra.mxu0 0.0
    %1792 = vmatprep.subr.mxu0 0.0
    %1793 = vmatpush1.msra.mxu0 0.0
    %1794 = vmatprep.subr.mxu0 0.0
    %1795 = vmatpush1.msra.mxu0 0.0
    %1796 = vmatprep.subr.mxu0 0.0
    %1797 = vmatpush1.msra.mxu0 0.0
    %1798 = vmatprep.subr.mxu0 0.0
    %1799 = vmatpush1.msra.mxu0 0.0
    %1800 = vmatprep.subr.mxu0 0.0
    %1801 = vmatpush1.msra.mxu0 0.0
    %1802 = vmatprep.subr.mxu0 0.0
    %1803 = vmatpush1.msra.mxu0 0.0
    %1804 = vmatprep.subr.mxu0 0.0
    %1805 = vmatpush1.msra.mxu0 0.0
    %1806 = vmatprep.subr.mxu0 0.0
    %1807 = vmatpush1.msra.mxu0 0.0
    %1808 = vmatprep.mubr.f32.mxu0 0.0
    %1809 = vmatmul.mubr.f32.gmra.mrb[0].mxu0 %v1736
    %v1810 = vpop.f32.mrb[0].mxu0
    %v1811 = vadd.f32 0.0, %v1810
    %v1812 = vpop.f32.mrb[0].mxu0
    %1813 = vmatprep.mubr.f32.mxu0 0.0
    %1814 = vmatmul.mubr.f32.gmra.mrb[0].mxu0 %v1739
    %v1815 = vpop.f32.mrb[0].mxu0
    %v1816 = vadd.f32 0.0, %v1815
    %v1817 = vpop.f32.mrb[0].mxu0
    %1818 = vmatprep.mubr.f32.mxu0 0.0
    %1819 = vmatmul.mubr.f32.gmra.mrb[0].mxu0 %v1742
    %v1820 = vpop.f32.mrb[0].mxu0
    %v1821 = vadd.f32 0.0, %v1820
    %v1822 = vpop.f32.mrb[0].mxu0
    %1823 = vdwg.mxu0
    %v1825 = vsel %vm399, %v1699, 0
    %v1828 = vsel %vm399, %v1700, 0
    %v1831 = vsel %vm399, %v1701, 0
    %1833 = vmatprep.subr.mxu0 0.0
    %1834 = vmatpush1.msra.mxu0 %v1694
    %1835 = vmatprep.subr.mxu0 0.0
    %1836 = vmatpush1.msra.mxu0 %v1695
    %1837 = vmatprep.subr.mxu0 0.0
    %1838 = vmatpush1.msra.mxu0 0.0
    %1839 = vmatprep.subr.mxu0 0.0
    %1840 = vmatpush1.msra.mxu0 0.0
    %1841 = vmatprep.subr.mxu0 0.0
    %1842 = vmatpush1.msra.mxu0 0.0
    %1843 = vmatprep.subr.mxu0 0.0
    %1844 = vmatpush1.msra.mxu0 0.0
    %1845 = vmatprep.subr.mxu0 0.0
    %1846 = vmatpush1.msra.mxu0 0.0
    %1847 = vmatprep.subr.mxu0 0.0
    %1848 = vmatpush1.msra.mxu0 0.0
    %1849 = vmatprep.subr.mxu0 0.0
    %1850 = vmatpush1.msra.mxu0 0.0
    %1851 = vmatprep.subr.mxu0 0.0
    %1852 = vmatpush1.msra.mxu0 0.0
    %1853 = vmatprep.subr.mxu0 0.0
    %1854 = vmatpush1.msra.mxu0 0.0
    %1855 = vmatprep.subr.mxu0 0.0
    %1856 = vmatpush1.msra.mxu0 0.0
    %1857 = vmatprep.subr.mxu0 0.0
    %1858 = vmatpush1.msra.mxu0 0.0
    %1859 = vmatprep.subr.mxu0 0.0
    %1860 = vmatpush1.msra.mxu0 0.0
    %1861 = vmatprep.subr.mxu0 0.0
    %1862 = vmatpush1.msra.mxu0 0.0
    %1863 = vmatprep.subr.mxu0 0.0
    %1864 = vmatpush1.msra.mxu0 0.0
    %1865 = vmatprep.subr.mxu0 0.0
    %1866 = vmatpush1.msra.mxu0 0.0
    %1867 = vmatprep.subr.mxu0 0.0
    %1868 = vmatpush1.msra.mxu0 0.0
    %1869 = vmatprep.subr.mxu0 0.0
    %1870 = vmatpush1.msra.mxu0 0.0
    %1871 = vmatprep.subr.mxu0 0.0
    %1872 = vmatpush1.msra.mxu0 0.0
    %1873 = vmatprep.subr.mxu0 0.0
    %1874 = vmatpush1.msra.mxu0 0.0
    %1875 = vmatprep.subr.mxu0 0.0
    %1876 = vmatpush1.msra.mxu0 0.0
    %1877 = vmatprep.subr.mxu0 0.0
    %1878 = vmatpush1.msra.mxu0 0.0
    %1879 = vmatprep.subr.mxu0 0.0
    %1880 = vmatpush1.msra.mxu0 0.0
    %1881 = vmatprep.subr.mxu0 0.0
    %1882 = vmatpush1.msra.mxu0 0.0
    %1883 = vmatprep.subr.mxu0 0.0
    %1884 = vmatpush1.msra.mxu0 0.0
    %1885 = vmatprep.subr.mxu0 0.0
    %1886 = vmatpush1.msra.mxu0 0.0
    %1887 = vmatprep.subr.mxu0 0.0
    %1888 = vmatpush1.msra.mxu0 0.0
    %1889 = vmatprep.subr.mxu0 0.0
    %1890 = vmatpush1.msra.mxu0 0.0
    %1891 = vmatprep.subr.mxu0 0.0
    %1892 = vmatpush1.msra.mxu0 0.0
    %1893 = vmatprep.subr.mxu0 0.0
    %1894 = vmatpush1.msra.mxu0 0.0
    %1895 = vmatprep.subr.mxu0 0.0
    %1896 = vmatpush1.msra.mxu0 0.0
    %1897 = vmatprep.mubr.f32.mxu0 0.0
    %1898 = vmatmul.mubr.f32.gmra.mrb[0].mxu0 %v1825
    %v1899 = vpop.f32.mrb[0].mxu0
    %v1900 = vadd.f32 0.0, %v1899
    %v1901 = vpop.f32.mrb[0].mxu0
    %1902 = vmatprep.mubr.f32.mxu0 0.0
    %1903 = vmatmul.mubr.f32.gmra.mrb[0].mxu0 %v1828
    %v1904 = vpop.f32.mrb[0].mxu0
    %v1905 = vadd.f32 0.0, %v1904
    %v1906 = vpop.f32.mrb[0].mxu0
    %1907 = vmatprep.mubr.f32.mxu0 0.0
    %1908 = vmatmul.mubr.f32.gmra.mrb[0].mxu0 %v1831
    %v1909 = vpop.f32.mrb[0].mxu0
    %v1910 = vadd.f32 0.0, %v1909
    %v1911 = vpop.f32.mrb[0].mxu0
    %1912 = vdwg.mxu0
    %vm1913 = vcmask 195584
    %v1915 = vsel %vm1913, %v1900, 0
    %v1918 = vsel %vm1913, %v1905, 0
    %v1921 = vsel %vm1913, %v1910, 0
    %1923 = vmatprep.subr.mxu0 0.0
    %1924 = vmatpush1.msra.mxu0 %v1705
    %1925 = vmatprep.subr.mxu0 0.0
    %1926 = vmatpush1.msra.mxu0 %v1706
    %1927 = vmatprep.subr.mxu0 0.0
    %1928 = vmatpush1.msra.mxu0 %v1707
    %1929 = vmatprep.subr.mxu0 0.0
    %1930 = vmatpush1.msra.mxu0 0.0
    %1931 = vmatprep.subr.mxu0 0.0
    %1932 = vmatpush1.msra.mxu0 0.0
    %1933 = vmatprep.subr.mxu0 0.0
    %1934 = vmatpush1.msra.mxu0 0.0
    %1935 = vmatprep.subr.mxu0 0.0
    %1936 = vmatpush1.msra.mxu0 0.0
    %1937 = vmatprep.subr.mxu0 0.0
    %1938 = vmatpush1.msra.mxu0 0.0
    %1939 = vmatprep.subr.mxu0 0.0
    %1940 = vmatpush1.msra.mxu0 0.0
    %1941 = vmatprep.subr.mxu0 0.0
    %1942 = vmatpush1.msra.mxu0 0.0
    %1943 = vmatprep.subr.mxu0 0.0
    %1944 = vmatpush1.msra.mxu0 0.0
    %1945 = vmatprep.subr.mxu0 0.0
    %1946 = vmatpush1.msra.mxu0 0.0
    %1947 = vmatprep.subr.mxu0 0.0
    %1948 = vmatpush1.msra.mxu0 0.0
    %1949 = vmatprep.subr.mxu0 0.0
    %1950 = vmatpush1.msra.mxu0 0.0
    %1951 = vmatprep.subr.mxu0 0.0
    %1952 = vmatpush1.msra.mxu0 0.0
    %1953 = vmatprep.subr.mxu0 0.0
    %1954 = vmatpush1.msra.mxu0 0.0
    %1955 = vmatprep.subr.mxu0 0.0
    %1956 = vmatpush1.msra.mxu0 0.0
    %1957 = vmatprep.subr.mxu0 0.0
    %1958 = vmatpush1.msra.mxu0 0.0
    %1959 = vmatprep.subr.mxu0 0.0
    %1960 = vmatpush1.msra.mxu0 0.0
    %1961 = vmatprep.subr.mxu0 0.0
    %1962 = vmatpush1.msra.mxu0 0.0
    %1963 = vmatprep.subr.mxu0 0.0
    %1964 = vmatpush1.msra.mxu0 0.0
    %1965 = vmatprep.subr.mxu0 0.0
    %1966 = vmatpush1.msra.mxu0 0.0
    %1967 = vmatprep.subr.mxu0 0.0
    %1968 = vmatpush1.msra.mxu0 0.0
    %1969 = vmatprep.subr.mxu0 0.0
    %1970 = vmatpush1.msra.mxu0 0.0
    %1971 = vmatprep.subr.mxu0 0.0
    %1972 = vmatpush1.msra.mxu0 0.0
    %1973 = vmatprep.subr.mxu0 0.0
    %1974 = vmatpush1.msra.mxu0 0.0
    %1975 = vmatprep.subr.mxu0 0.0
    %1976 = vmatpush1.msra.mxu0 0.0
    %1977 = vmatprep.subr.mxu0 0.0
    %1978 = vmatpush1.msra.mxu0 0.0
    %1979 = vmatprep.subr.mxu0 0.0
    %1980 = vmatpush1.msra.mxu0 0.0
    %1981 = vmatprep.subr.mxu0 0.0
    %1982 = vmatpush1.msra.mxu0 0.0
    %1983 = vmatprep.subr.mxu0 0.0
    %1984 = vmatpush1.msra.mxu0 0.0
    %1985 = vmatprep.subr.mxu0 0.0
    %1986 = vmatpush1.msra.mxu0 0.0
    %1987 = vmatprep.mubr.f32.mxu0 0.0
    %1988 = vmatmul.mubr.f32.gmra.mrb[0].mxu0 %v1915
    %v1989 = vpop.f32.mrb[0].mxu0
    %v1990 = vadd.f32 0.0, %v1989
    %v1991 = vpop.f32.mrb[0].mxu0
    %1992 = vmatprep.mubr.f32.mxu0 0.0
    %1993 = vmatmul.mubr.f32.gmra.mrb[0].mxu0 %v1918
    %v1994 = vpop.f32.mrb[0].mxu0
    %v1995 = vadd.f32 0.0, %v1994
    %v1996 = vpop.f32.mrb[0].mxu0
    %1997 = vmatprep.mubr.f32.mxu0 0.0
    %1998 = vmatmul.mubr.f32.gmra.mrb[0].mxu0 %v1921
    %v1999 = vpop.f32.mrb[0].mxu0
    %v2000 = vadd.f32 0.0, %v1999
    %v2001 = vpop.f32.mrb[0].mxu0
    %2002 = vdwg.mxu0
    %v2004 = vsel %vm1913, %v1811, 0
    %v2007 = vsel %vm1913, %v1816, 0
    %v2010 = vsel %vm1913, %v1821, 0
    %2012 = vmatprep.subr.mxu0 0.0
    %2013 = vmatpush1.msra.mxu0 %v1702
    %2014 = vmatprep.subr.mxu0 0.0
    %2015 = vmatpush1.msra.mxu0 %v1703
    %2016 = vmatprep.subr.mxu0 0.0
    %2017 = vmatpush1.msra.mxu0 %v1704
    %2018 = vmatprep.subr.mxu0 0.0
    %2019 = vmatpush1.msra.mxu0 0.0
    %2020 = vmatprep.subr.mxu0 0.0
    %2021 = vmatpush1.msra.mxu0 0.0
    %2022 = vmatprep.subr.mxu0 0.0
    %2023 = vmatpush1.msra.mxu0 0.0
    %2024 = vmatprep.subr.mxu0 0.0
    %2025 = vmatpush1.msra.mxu0 0.0
    %2026 = vmatprep.subr.mxu0 0.0
    %2027 = vmatpush1.msra.mxu0 0.0
    %2028 = vmatprep.subr.mxu0 0.0
    %2029 = vmatpush1.msra.mxu0 0.0
    %2030 = vmatprep.subr.mxu0 0.0
    %2031 = vmatpush1.msra.mxu0 0.0
    %2032 = vmatprep.subr.mxu0 0.0
    %2033 = vmatpush1.msra.mxu0 0.0
    %2034 = vmatprep.subr.mxu0 0.0
    %2035 = vmatpush1.msra.mxu0 0.0
    %2036 = vmatprep.subr.mxu0 0.0
    %2037 = vmatpush1.msra.mxu0 0.0
    %2038 = vmatprep.subr.mxu0 0.0
    %2039 = vmatpush1.msra.mxu0 0.0
    %2040 = vmatprep.subr.mxu0 0.0
    %2041 = vmatpush1.msra.mxu0 0.0
    %2042 = vmatprep.subr.mxu0 0.0
    %2043 = vmatpush1.msra.mxu0 0.0
    %2044 = vmatprep.subr.mxu0 0.0
    %2045 = vmatpush1.msra.mxu0 0.0
    %2046 = vmatprep.subr.mxu0 0.0
    %2047 = vmatpush1.msra.mxu0 0.0
    %2048 = vmatprep.subr.mxu0 0.0
    %2049 = vmatpush1.msra.mxu0 0.0
    %2050 = vmatprep.subr.mxu0 0.0
    %2051 = vmatpush1.msra.mxu0 0.0
    %2052 = vmatprep.subr.mxu0 0.0
    %2053 = vmatpush1.msra.mxu0 0.0
    %2054 = vmatprep.subr.mxu0 0.0
    %2055 = vmatpush1.msra.mxu0 0.0
    %2056 = vmatprep.subr.mxu0 0.0
    %2057 = vmatpush1.msra.mxu0 0.0
    %2058 = vmatprep.subr.mxu0 0.0
    %2059 = vmatpush1.msra.mxu0 0.0
    %2060 = vmatprep.subr.mxu0 0.0
    %2061 = vmatpush1.msra.mxu0 0.0
    %2062 = vmatprep.subr.mxu0 0.0
    %2063 = vmatpush1.msra.mxu0 0.0
    %2064 = vmatprep.subr.mxu0 0.0
    %2065 = vmatpush1.msra.mxu0 0.0
    %2066 = vmatprep.subr.mxu0 0.0
    %2067 = vmatpush1.msra.mxu0 0.0
    %2068 = vmatprep.subr.mxu0 0.0
    %2069 = vmatpush1.msra.mxu0 0.0
    %2070 = vmatprep.subr.mxu0 0.0
    %2071 = vmatpush1.msra.mxu0 0.0
    %2072 = vmatprep.subr.mxu0 0.0
    %2073 = vmatpush1.msra.mxu0 0.0
    %2074 = vmatprep.subr.mxu0 0.0
    %2075 = vmatpush1.msra.mxu0 0.0
    %2076 = vmatprep.mubr.f32.mxu0 0.0
    %2077 = vmatmul.mubr.f32.gmra.mrb[0].mxu0 %v2004
    %v2078 = vpop.f32.mrb[0].mxu0
    %v2079 = vadd.f32 %v1990, %v2078
    %v2080 = vpop.f32.mrb[0].mxu0
    %2081 = vmatprep.mubr.f32.mxu0 0.0
    %2082 = vmatmul.mubr.f32.gmra.mrb[0].mxu0 %v2007
    %v2083 = vpop.f32.mrb[0].mxu0
    %v2084 = vadd.f32 %v1995, %v2083
    %v2085 = vpop.f32.mrb[0].mxu0
    %2086 = vmatprep.mubr.f32.mxu0 0.0
    %2087 = vmatmul.mubr.f32.gmra.mrb[0].mxu0 %v2010
    %v2088 = vpop.f32.mrb[0].mxu0
    %v2089 = vadd.f32 %v2000, %v2088
    %v2090 = vpop.f32.mrb[0].mxu0
    %2091 = vdwg.mxu0
    %v2093 = vlaneseq
    %v2094 = vshrl.u32 %v2093, 7
    %v2095 = vsub.s32 0, %v2094
    %v2096 = vrot.slane %v1708, %v2095
    %v2098 = vadd.f32 %v2079, %v2096
    %v2099 = vadd.f32 %v2084, %v2096
    %v2100 = vadd.f32 %v2089, %v2096
    %v2101 = vmax.f32 %v2098, 0.0
    %v2102 = vmax.f32 %v2099, 0.0
    %v2103 = vmax.f32 %v2100, 0.0
    %v2105 = vlaneseq
    %v2106 = vshrl.u32 %v2105, 7
    %v2107 = vsub.s32 0, %v2106
    %v2108 = vrot.slane %v1721, %v2107
    %vm2110 = vcmask 785408
    %v2112 = vsel %vm2110, %v2101, 0
    %v2115 = vsel %vm2110, %v2102, 0
    %v2118 = vsel %vm2110, %v2103, 0
    %2120 = vmatprep.subr.mxu0 0.0
    %2121 = vmatpush1.msra.mxu0 %v1709
    %2122 = vmatprep.subr.mxu0 0.0
    %2123 = vmatpush1.msra.mxu0 %v1710
    %2124 = vmatprep.subr.mxu0 0.0
    %2125 = vmatpush1.msra.mxu0 %v1711
    %2126 = vmatprep.subr.mxu0 0.0
    %2127 = vmatpush1.msra.mxu0 %v1712
    %2128 = vmatprep.subr.mxu0 0.0
    %2129 = vmatpush1.msra.mxu0 %v1713
    %2130 = vmatprep.subr.mxu0 0.0
    %2131 = vmatpush1.msra.mxu0 %v1714
    %2132 = vmatprep.subr.mxu0 0.0
    %2133 = vmatpush1.msra.mxu0 %v1715
    %2134 = vmatprep.subr.mxu0 0.0
    %2135 = vmatpush1.msra.mxu0 %v1716
    %2136 = vmatprep.subr.mxu0 0.0
    %2137 = vmatpush1.msra.mxu0 %v1717
    %2138 = vmatprep.subr.mxu0 0.0
    %2139 = vmatpush1.msra.mxu0 %v1718
    %2140 = vmatprep.subr.mxu0 0.0
    %2141 = vmatpush1.msra.mxu0 %v1719
    %2142 = vmatprep.subr.mxu0 0.0
    %2143 = vmatpush1.msra.mxu0 %v1720
    %2144 = vmatprep.subr.mxu0 0.0
    %2145 = vmatpush1.msra.mxu0 0.0
    %2146 = vmatprep.subr.mxu0 0.0
    %2147 = vmatpush1.msra.mxu0 0.0
    %2148 = vmatprep.subr.mxu0 0.0
    %2149 = vmatpush1.msra.mxu0 0.0
    %2150 = vmatprep.subr.mxu0 0.0
    %2151 = vmatpush1.msra.mxu0 0.0
    %2152 = vmatprep.subr.mxu0 0.0
    %2153 = vmatpush1.msra.mxu0 0.0
    %2154 = vmatprep.subr.mxu0 0.0
    %2155 = vmatpush1.msra.mxu0 0.0
    %2156 = vmatprep.subr.mxu0 0.0
    %2157 = vmatpush1.msra.mxu0 0.0
    %2158 = vmatprep.subr.mxu0 0.0
    %2159 = vmatpush1.msra.mxu0 0.0
    %2160 = vmatprep.subr.mxu0 0.0
    %2161 = vmatpush1.msra.mxu0 0.0
    %2162 = vmatprep.subr.mxu0 0.0
    %2163 = vmatpush1.msra.mxu0 0.0
    %2164 = vmatprep.subr.mxu0 0.0
    %2165 = vmatpush1.msra.mxu0 0.0
    %2166 = vmatprep.subr.mxu0 0.0
    %2167 = vmatpush1.msra.mxu0 0.0
    %2168 = vmatprep.subr.mxu0 0.0
    %2169 = vmatpush1.msra.mxu0 0.0
    %2170 = vmatprep.subr.mxu0 0.0
    %2171 = vmatpush1.msra.mxu0 0.0
    %2172 = vmatprep.subr.mxu0 0.0
    %2173 = vmatpush1.msra.mxu0 0.0
    %2174 = vmatprep.subr.mxu0 0.0
    %2175 = vmatpush1.msra.mxu0 0.0
    %2176 = vmatprep.subr.mxu0 0.0
    %2177 = vmatpush1.msra.mxu0 0.0
    %2178 = vmatprep.subr.mxu0 0.0
    %2179 = vmatpush1.msra.mxu0 0.0
    %2180 = vmatprep.subr.mxu0 0.0
    %2181 = vmatpush1.msra.mxu0 0.0
    %2182 = vmatprep.subr.mxu0 0.0
    %2183 = vmatpush1.msra.mxu0 0.0
    %2184 = vmatprep.mubr.f32.mxu0 0.0
    %2185 = vmatmul.mubr.f32.gmra.mrb[0].mxu0 %v2112
    %v2186 = vpop.f32.mrb[0].mxu0
    %v2187 = vadd.f32 %v2108, %v2186
    %v2188 = vpop.f32.mrb[0].mxu0
    %2189 = vmatprep.mubr.f32.mxu0 0.0
    %2190 = vmatmul.mubr.f32.gmra.mrb[0].mxu0 %v2115
    %v2191 = vpop.f32.mrb[0].mxu0
    %v2192 = vadd.f32 %v2108, %v2191
    %v2193 = vpop.f32.mrb[0].mxu0
    %2194 = vmatprep.mubr.f32.mxu0 0.0
    %2195 = vmatmul.mubr.f32.gmra.mrb[0].mxu0 %v2118
    %v2196 = vpop.f32.mrb[0].mxu0
    %v2197 = vadd.f32 %v2108, %v2196
    %v2198 = vpop.f32.mrb[0].mxu0
    %2199 = vdwg.mxu0
    %v2200 = vmax.f32 %v2187, 0.0
    %v2201 = vmax.f32 %v2192, 0.0
    %v2202 = vmax.f32 %v2197, 0.0
    %v2204 = vlaneseq
    %v2205 = vshrl.u32 %v2204, 7
    %v2206 = vsub.s32 0, %v2205
    %v2207 = vrot.slane %v1734, %v2206
    %v2210 = vsel %vm2110, %v2200, 0
    %v2213 = vsel %vm2110, %v2201, 0
    %v2216 = vsel %vm2110, %v2202, 0
    %2218 = vmatprep.subr.mxu0 0.0
    %2219 = vmatpush1.msra.mxu0 %v1722
    %2220 = vmatprep.subr.mxu0 0.0
    %2221 = vmatpush1.msra.mxu0 %v1723
    %2222 = vmatprep.subr.mxu0 0.0
    %2223 = vmatpush1.msra.mxu0 %v1724
    %2224 = vmatprep.subr.mxu0 0.0
    %2225 = vmatpush1.msra.mxu0 %v1725
    %2226 = vmatprep.subr.mxu0 0.0
    %2227 = vmatpush1.msra.mxu0 %v1726
    %2228 = vmatprep.subr.mxu0 0.0
    %2229 = vmatpush1.msra.mxu0 %v1727
    %2230 = vmatprep.subr.mxu0 0.0
    %2231 = vmatpush1.msra.mxu0 %v1728
    %2232 = vmatprep.subr.mxu0 0.0
    %2233 = vmatpush1.msra.mxu0 %v1729
    %2234 = vmatprep.subr.mxu0 0.0
    %2235 = vmatpush1.msra.mxu0 %v1730
    %2236 = vmatprep.subr.mxu0 0.0
    %2237 = vmatpush1.msra.mxu0 %v1731
    %2238 = vmatprep.subr.mxu0 0.0
    %2239 = vmatpush1.msra.mxu0 %v1732
    %2240 = vmatprep.subr.mxu0 0.0
    %2241 = vmatpush1.msra.mxu0 %v1733
    %2242 = vmatprep.subr.mxu0 0.0
    %2243 = vmatpush1.msra.mxu0 0.0
    %2244 = vmatprep.subr.mxu0 0.0
    %2245 = vmatpush1.msra.mxu0 0.0
    %2246 = vmatprep.subr.mxu0 0.0
    %2247 = vmatpush1.msra.mxu0 0.0
    %2248 = vmatprep.subr.mxu0 0.0
    %2249 = vmatpush1.msra.mxu0 0.0
    %2250 = vmatprep.subr.mxu0 0.0
    %2251 = vmatpush1.msra.mxu0 0.0
    %2252 = vmatprep.subr.mxu0 0.0
    %2253 = vmatpush1.msra.mxu0 0.0
    %2254 = vmatprep.subr.mxu0 0.0
    %2255 = vmatpush1.msra.mxu0 0.0
    %2256 = vmatprep.subr.mxu0 0.0
    %2257 = vmatpush1.msra.mxu0 0.0
    %2258 = vmatprep.subr.mxu0 0.0
    %2259 = vmatpush1.msra.mxu0 0.0
    %2260 = vmatprep.subr.mxu0 0.0
    %2261 = vmatpush1.msra.mxu0 0.0
    %2262 = vmatprep.subr.mxu0 0.0
    %2263 = vmatpush1.msra.mxu0 0.0
    %2264 = vmatprep.subr.mxu0 0.0
    %2265 = vmatpush1.msra.mxu0 0.0
    %2266 = vmatprep.subr.mxu0 0.0
    %2267 = vmatpush1.msra.mxu0 0.0
    %2268 = vmatprep.subr.mxu0 0.0
    %2269 = vmatpush1.msra.mxu0 0.0
    %2270 = vmatprep.subr.mxu0 0.0
    %2271 = vmatpush1.msra.mxu0 0.0
    %2272 = vmatprep.subr.mxu0 0.0
    %2273 = vmatpush1.msra.mxu0 0.0
    %2274 = vmatprep.subr.mxu0 0.0
    %2275 = vmatpush1.msra.mxu0 0.0
    %2276 = vmatprep.subr.mxu0 0.0
    %2277 = vmatpush1.msra.mxu0 0.0
    %2278 = vmatprep.subr.mxu0 0.0
    %2279 = vmatpush1.msra.mxu0 0.0
    %2280 = vmatprep.subr.mxu0 0.0
    %2281 = vmatpush1.msra.mxu0 0.0
    %2282 = vmatprep.mubr.f32.mxu0 0.0
    %2283 = vmatmul.mubr.f32.gmra.mrb[0].mxu0 %v2210
    %v2284 = vpop.f32.mrb[0].mxu0
    %v2285 = vadd.f32 %v2207, %v2284
    %v2286 = vpop.f32.mrb[0].mxu0
    %2287 = vmatprep.mubr.f32.mxu0 0.0
    %2288 = vmatmul.mubr.f32.gmra.mrb[0].mxu0 %v2213
    %v2289 = vpop.f32.mrb[0].mxu0
    %v2290 = vadd.f32 %v2207, %v2289
    %v2291 = vpop.f32.mrb[0].mxu0
    %2292 = vmatprep.mubr.f32.mxu0 0.0
    %2293 = vmatmul.mubr.f32.gmra.mrb[0].mxu0 %v2216
    %v2294 = vpop.f32.mrb[0].mxu0
    %v2295 = vadd.f32 %v2207, %v2294
    %v2296 = vpop.f32.mrb[0].mxu0
    %2297 = vdwg.mxu0
    %2298 = vst [vmem:[#allocation34] sm:$0xff] %v2285
    %2299 = vst [vmem:[#allocation34 + $0x8] sm:$0xff] %v2290
    %2300 = vst [vmem:[#allocation34 + $0x10] sm:$0xff] %v2295
    // Predicated region
    $region210: #{tpu_custom_call.1} parent=1 // pred_check
      _
    $region211: #{tpu_custom_call.1} parent=1 // pred_check_branch
      %2302 = sbr.rel (0) target = $region213
    $region212: #{tpu_custom_call.1} parent=1 // pred_region
      %s2304 = ssub.s32 384, 384
      %2305 = vsyncadd [#allocation4], %s2304
      %s2306 = sshll.u32 [#allocation34], 4
      %s2307 = int_to_ptr.vmem [resolvable:$true] %s2306
      %2312 = dma.vmem_to_hbm [thread:$0]  %s2307, 384, %s65, [#allocation4], 128, 128, 8
    $region213: #{tpu_custom_call.1} parent=1 // pred_fallthru
      _
    // Predicated region
    $region214: #{tpu_custom_call.1} parent=1 // pred_check
      _
    $region215: #{tpu_custom_call.1} parent=1 // pred_check_branch
      %2314 = sbr.rel (0) target = $region217
    $region216: #{tpu_custom_call.1} parent=1 // pred_region
      %2315 = dma.done [#allocation4], 384
    $region217: #{tpu_custom_call.1} parent=1 // pred_fallthru
      _
    %2316 = vsyncpa [#allocation3], 1
    %2317 = vsyncpa [#allocation6], 1
    %2318 = vsyncpa [#allocation9], 1
    %2319 = vsyncpa [#allocation12], 1
    %2320 = vsyncpa [#allocation15], 1
    %2321 = vsyncpa [#allocation18], 1
    %2322 = vsyncpa [#allocation21], 1
    %2323 = vsyncpa [#allocation24], 1
    %2324 = vsyncpa [#allocation27], 1
    %2325 = vsyncpa [#allocation30], 1
    %2326 = vsyncpa [#allocation33], 1
    %2327 = vsyncpa [#allocation4], 1

</llo_original>
